<compile_context>
chip_gen: v7x
topology: tpu7x:2x2x1
jax: 0.10.0
libtpu: 0.0.40
codegen_flags: <defaults>
</compile_context>

<pallas_src>
import jax
import jax.numpy as jnp
from jax.experimental import pallas as pl
from jax.experimental.pallas import tpu as pltpu

ALPHA = 0.2  # LeakyReLU negative slope (nn.LeakyReLU(alpha=0.2) in the reference)


def _gat_model_kernel(x_ref, wt_ref, a12_ref, adj_ref, out_ref):
    num_layers = wt_ref.shape[0]

    # Edge mask: computed once, reused by every layer (adj arrives as int8).
    mask = adj_ref[...].astype(jnp.float32) > 0.0                            # (N, N)

    h_cur = x_ref[...]                                                        # (N, F)
    for li in range(num_layers):                                              # static unroll (L = 3)
        # h = inputs @ w.T   (weights are passed pre-transposed)
        h = jnp.dot(h_cur, wt_ref[li], preferred_element_type=jnp.float32)    # (N, F)

        a12 = a12_ref[li]                                                     # (2, F): row0 = a1, row1 = a2
        # s1[i] = h[i].a1 as a column; s2t[j] = h[j].a2 as a row (no transposes).
        s1 = jax.lax.dot_general(h, a12[0:1, :], (((1,), (1,)), ((), ())),
                                 preferred_element_type=jnp.float32)          # (N, 1)
        s2t = jax.lax.dot_general(a12[1:2, :], h, (((1,), (1,)), ((), ())),
                                  preferred_element_type=jnp.float32)         # (1, N)
        key = s1 + s2t                                                        # (N, N)
        key = jnp.where(key > 0, key, ALPHA * key)                            # LeakyReLU

        # Non-edges set to 0.0 (NOT -inf), exactly as the quirky PyTorch reference.
        masked = jnp.where(mask, key, 0.0)

        # Row-wise softmax (dim=1).  Reciprocal: EUP approximate estimate +
        # one Newton step (full f32 accuracy, ~free on the VPU for an (N,1) vec).
        m = jnp.max(masked, axis=1, keepdims=True)
        e = jnp.exp(masked - m)
        denom = jnp.sum(e, axis=1, keepdims=True)
        r = pl.reciprocal(denom, approx=True)
        r = r * (2.0 - denom * r)          # Newton refinement: err ~2^-24
        attn = e * r

        # h' = attn @ h  (f32 MXU accumulation)
        h_cur = jnp.dot(attn, h, preferred_element_type=jnp.float32)          # (N, F)

    out_ref[...] = h_cur.astype(out_ref.dtype)


def own_gat_model_forward(params, adj, inputs):
    """OwnGATModel.forward: fused chain of OwnGATConv layers (num_heads=1, bias=False).

    # TODO(synk): the reference passes activation=None and then calls
    # self._activation(h_prime) on non-final layers (would raise in PyTorch);
    # treated as identity here. average_head on the final layer is a no-op for
    # num_heads == 1, and outputs.squeeze_() is a no-op for N > 1, F > 1.
    # TODO(synk): for large N (esp. v7x 64 MiB VMEM), row-tile adj/key/attn as
    # (tm, N) blocks over a parallel grid instead of full (N, N) residents.
    """
    n, f_in = inputs.shape
    f_out = params[0][0].shape[0]
    # Chaining layers requires f_in == f_out, same constraint as the PyTorch model
    # (which uses input_size as in_features for every layer).
    wt = jnp.stack([w.T for (w, _) in params])                    # (L, F_in, F_out)
    a12 = jnp.stack([a.reshape(2, f_out) for (_, a) in params])   # (L, 2, F_out)
    adj_i8 = (adj > 0).astype(jnp.int8)                           # 4x smaller DMA

    vmem = pl.BlockSpec(memory_space=pltpu.MemorySpace.VMEM)
    return pl.pallas_call(
        _gat_model_kernel,
        out_shape=jax.ShapeDtypeStruct((n, f_out), jnp.float32),
        in_specs=[vmem, vmem, vmem, vmem],
        out_specs=vmem,
    )(inputs, wt, a12, adj_i8)


def xavier_uniform(key, shape, gain):
    fan_out, fan_in = shape[0], shape[1]
    bound = gain * (6.0 / (fan_in + fan_out)) ** 0.5
    return jax.random.uniform(key, shape, jnp.float32, -bound, bound)


if __name__ == "__main__":
    N = 128          # number of graph nodes
    F_IN = 32        # input_size (== hidden_size, required for the layer chain)
    HID = 32         # hidden_size
    N_LAYERS = 2     # OwnGATModel builds n_layers + 1 = 3 GAT layers total
    GAIN = 2.0 ** 0.5   # nn.init.calculate_gain('relu')

    key = jax.random.PRNGKey(0)
    keys = jax.random.split(key, 2 + 2 * (N_LAYERS + 1))
    k_x, k_adj, k_params = keys[0], keys[1], keys[2:]

    x = jax.random.normal(k_x, (N, F_IN), jnp.float32)
    adj = (jax.random.uniform(k_adj, (N, N)) < 0.1).astype(jnp.float32)
    adj = jnp.maximum(adj, jnp.eye(N, dtype=jnp.float32))   # add self-loops

    # Deterministic xavier_uniform(gain=sqrt(2)) params: per layer W (HID, F_in), a (2*HID, 1)
    params = []
    for li in range(N_LAYERS + 1):
        kw, ka = k_params[2 * li], k_params[2 * li + 1]
        w = xavier_uniform(kw, (HID, F_IN if li == 0 else HID), GAIN)
        a = xavier_uniform(ka, (2 * HID, 1), GAIN)
        params.append((w, a))

    fwd = jax.jit(own_gat_model_forward)
    out = jax.block_until_ready(fwd(params, adj, x))

    # pure-JAX reference for correctness
    ref = x
    for w, a in params:
        h = ref @ w.T
        s = h @ a[:HID] + (h @ a[HID:]).T
        s = jnp.where(s > 0, s, ALPHA * s)
        masked = jnp.where(adj > 0, s, 0.0)
        ref = jax.nn.softmax(masked, axis=1) @ h

    assert out.shape == (N, HID), out.shape
    err = float(jnp.abs(out - ref).max())
    assert jnp.allclose(out, ref, rtol=1e-3, atol=1e-3), err
    print("KERNEL_OK")
</pallas_src>

<mosaic_0001>
module attributes {stable_mosaic.version = 11 : i64} {
  func.func @_gat_model_kernel(%arg0: memref<128x32xf32, #tpu.memory_space<vmem>>, %arg1: memref<3x32x32xf32, #tpu.memory_space<vmem>>, %arg2: memref<3x2x32xf32, #tpu.memory_space<vmem>>, %arg3: memref<128x128xi8, #tpu.memory_space<vmem>>, %arg4: memref<128x32xf32, #tpu.memory_space<vmem>>) attributes {dimension_semantics = [], scalar_prefetch = 0 : i64, scratch_operands = 0 : i64, tpu.core_type = #tpu.core_type<tc>} {
    %c0 = arith.constant 0 : index
    %c0_0 = arith.constant 0 : index
    %0 = vector.load %arg3[%c0, %c0_0] : memref<128x128xi8, #tpu.memory_space<vmem>>, vector<128x128xi8>
    %1 = arith.sitofp %0 : vector<128x128xi8> to vector<128x128xf32>
    %cst = arith.constant 0.000000e+00 : f32
    %2 = vector.broadcast %cst : f32 to vector<128x128xf32>
    %3 = arith.cmpf ogt, %1, %2 : vector<128x128xf32>
    %c0_1 = arith.constant 0 : index
    %c0_2 = arith.constant 0 : index
    %4 = vector.load %arg0[%c0_1, %c0_2] : memref<128x32xf32, #tpu.memory_space<vmem>>, vector<128x32xf32>
    %c0_3 = arith.constant 0 : index
    %c0_4 = arith.constant 0 : index
    %c0_5 = arith.constant 0 : index
    %5 = vector.load %arg1[%c0_3, %c0_4, %c0_5] : memref<3x32x32xf32, #tpu.memory_space<vmem>>, vector<1x32x32xf32>
    %6 = vector.shape_cast %5 : vector<1x32x32xf32> to vector<32x32xf32>
    %cst_6 = arith.constant dense<0.000000e+00> : vector<128x32xf32>
    %7 = tpu.matmul %4, %6, %cst_6 {dimension_numbers = #tpu.dot_dimension_numbers<[1], [0], [0], [1], [0, 0, 1, 1], [], []>} : vector<128x32xf32>, vector<32x32xf32>, vector<128x32xf32> -> vector<128x32xf32>
    %c0_7 = arith.constant 0 : index
    %c0_8 = arith.constant 0 : index
    %c0_9 = arith.constant 0 : index
    %8 = vector.load %arg2[%c0_7, %c0_8, %c0_9] : memref<3x2x32xf32, #tpu.memory_space<vmem>>, vector<1x2x32xf32>
    %9 = vector.shape_cast %8 : vector<1x2x32xf32> to vector<2x32xf32>
    %10 = vector.extract_strided_slice %9 {offsets = [0, 0], sizes = [1, 32], strides = [1, 1]} : vector<2x32xf32> to vector<1x32xf32>
    %cst_10 = arith.constant dense<0.000000e+00> : vector<128x1xf32>
    %11 = tpu.matmul %7, %10, %cst_10 {dimension_numbers = #tpu.dot_dimension_numbers<[1], [1], [0], [0], [0, 0, 1, 0], [], []>} : vector<128x32xf32>, vector<1x32xf32>, vector<128x1xf32> -> vector<128x1xf32>
    %12 = vector.extract_strided_slice %9 {offsets = [1, 0], sizes = [1, 32], strides = [1, 1]} : vector<2x32xf32> to vector<1x32xf32>
    %cst_11 = arith.constant dense<0.000000e+00> : vector<1x128xf32>
    %13 = tpu.matmul %12, %7, %cst_11 {dimension_numbers = #tpu.dot_dimension_numbers<[1], [1], [0], [0], [0, 0, 1, 0], [], []>} : vector<1x32xf32>, vector<128x32xf32>, vector<1x128xf32> -> vector<1x128xf32>
    %14 = vector.broadcast %11 : vector<128x1xf32> to vector<128x128xf32>
    %15 = vector.broadcast %13 : vector<1x128xf32> to vector<128x128xf32>
    %16 = arith.addf %14, %15 : vector<128x128xf32>
    %cst_12 = arith.constant 0.000000e+00 : f32
    %17 = vector.broadcast %cst_12 : f32 to vector<128x128xf32>
    %18 = arith.cmpf ogt, %16, %17 : vector<128x128xf32>
    %cst_13 = arith.constant 2.000000e-01 : f32
    %19 = vector.broadcast %cst_13 : f32 to vector<128x128xf32>
    %20 = arith.mulf %19, %16 : vector<128x128xf32>
    %21 = arith.select %18, %16, %20 : vector<128x128xi1>, vector<128x128xf32>
    %cst_14 = arith.constant 0.000000e+00 : f32
    %22 = vector.broadcast %cst_14 : f32 to vector<128x128xf32>
    %23 = arith.select %3, %21, %22 : vector<128x128xi1>, vector<128x128xf32>
    %cst_15 = arith.constant dense<0xFF800000> : vector<128xf32>
    %24 = vector.multi_reduction <maximumf>, %23, %cst_15 [1] : vector<128x128xf32> to vector<128xf32>
    %25 = vector.shape_cast %24 : vector<128xf32> to vector<128x1xf32>
    %26 = vector.broadcast %25 : vector<128x1xf32> to vector<128x128xf32>
    %27 = arith.subf %23, %26 : vector<128x128xf32>
    %28 = math.exp %27 : vector<128x128xf32>
    %cst_16 = arith.constant dense<0.000000e+00> : vector<128xf32>
    %29 = vector.multi_reduction <add>, %28, %cst_16 [1] : vector<128x128xf32> to vector<128xf32>
    %30 = vector.shape_cast %29 : vector<128xf32> to vector<128x1xf32>
    %31 = tpu.reciprocal %30 {approx = true} : vector<128x1xf32> -> vector<128x1xf32>
    %32 = arith.mulf %30, %31 : vector<128x1xf32>
    %cst_17 = arith.constant 2.000000e+00 : f32
    %33 = vector.broadcast %cst_17 : f32 to vector<128x1xf32>
    %34 = arith.subf %33, %32 : vector<128x1xf32>
    %35 = arith.mulf %31, %34 : vector<128x1xf32>
    %36 = vector.broadcast %35 : vector<128x1xf32> to vector<128x128xf32>
    %37 = arith.mulf %28, %36 : vector<128x128xf32>
    %cst_18 = arith.constant dense<0.000000e+00> : vector<128x32xf32>
    %38 = tpu.matmul %37, %7, %cst_18 {dimension_numbers = #tpu.dot_dimension_numbers<[1], [0], [0], [1], [0, 0, 1, 1], [], []>} : vector<128x128xf32>, vector<128x32xf32>, vector<128x32xf32> -> vector<128x32xf32>
    %c1 = arith.constant 1 : index
    %c0_19 = arith.constant 0 : index
    %c0_20 = arith.constant 0 : index
    %39 = vector.load %arg1[%c1, %c0_19, %c0_20] : memref<3x32x32xf32, #tpu.memory_space<vmem>>, vector<1x32x32xf32>
    %40 = vector.shape_cast %39 : vector<1x32x32xf32> to vector<32x32xf32>
    %cst_21 = arith.constant dense<0.000000e+00> : vector<128x32xf32>
    %41 = tpu.matmul %38, %40, %cst_21 {dimension_numbers = #tpu.dot_dimension_numbers<[1], [0], [0], [1], [0, 0, 1, 1], [], []>} : vector<128x32xf32>, vector<32x32xf32>, vector<128x32xf32> -> vector<128x32xf32>
    %c1_22 = arith.constant 1 : index
    %c0_23 = arith.constant 0 : index
    %c0_24 = arith.constant 0 : index
    %42 = vector.load %arg2[%c1_22, %c0_23, %c0_24] : memref<3x2x32xf32, #tpu.memory_space<vmem>>, vector<1x2x32xf32>
    %43 = vector.shape_cast %42 : vector<1x2x32xf32> to vector<2x32xf32>
    %44 = vector.extract_strided_slice %43 {offsets = [0, 0], sizes = [1, 32], strides = [1, 1]} : vector<2x32xf32> to vector<1x32xf32>
    %cst_25 = arith.constant dense<0.000000e+00> : vector<128x1xf32>
    %45 = tpu.matmul %41, %44, %cst_25 {dimension_numbers = #tpu.dot_dimension_numbers<[1], [1], [0], [0], [0, 0, 1, 0], [], []>} : vector<128x32xf32>, vector<1x32xf32>, vector<128x1xf32> -> vector<128x1xf32>
    %46 = vector.extract_strided_slice %43 {offsets = [1, 0], sizes = [1, 32], strides = [1, 1]} : vector<2x32xf32> to vector<1x32xf32>
    %cst_26 = arith.constant dense<0.000000e+00> : vector<1x128xf32>
    %47 = tpu.matmul %46, %41, %cst_26 {dimension_numbers = #tpu.dot_dimension_numbers<[1], [1], [0], [0], [0, 0, 1, 0], [], []>} : vector<1x32xf32>, vector<128x32xf32>, vector<1x128xf32> -> vector<1x128xf32>
    %48 = vector.broadcast %45 : vector<128x1xf32> to vector<128x128xf32>
    %49 = vector.broadcast %47 : vector<1x128xf32> to vector<128x128xf32>
    %50 = arith.addf %48, %49 : vector<128x128xf32>
    %cst_27 = arith.constant 0.000000e+00 : f32
    %51 = vector.broadcast %cst_27 : f32 to vector<128x128xf32>
    %52 = arith.cmpf ogt, %50, %51 : vector<128x128xf32>
    %cst_28 = arith.constant 2.000000e-01 : f32
    %53 = vector.broadcast %cst_28 : f32 to vector<128x128xf32>
    %54 = arith.mulf %53, %50 : vector<128x128xf32>
    %55 = arith.select %52, %50, %54 : vector<128x128xi1>, vector<128x128xf32>
    %cst_29 = arith.constant 0.000000e+00 : f32
    %56 = vector.broadcast %cst_29 : f32 to vector<128x128xf32>
    %57 = arith.select %3, %55, %56 : vector<128x128xi1>, vector<128x128xf32>
    %cst_30 = arith.constant dense<0xFF800000> : vector<128xf32>
    %58 = vector.multi_reduction <maximumf>, %57, %cst_30 [1] : vector<128x128xf32> to vector<128xf32>
    %59 = vector.shape_cast %58 : vector<128xf32> to vector<128x1xf32>
    %60 = vector.broadcast %59 : vector<128x1xf32> to vector<128x128xf32>
    %61 = arith.subf %57, %60 : vector<128x128xf32>
    %62 = math.exp %61 : vector<128x128xf32>
    %cst_31 = arith.constant dense<0.000000e+00> : vector<128xf32>
    %63 = vector.multi_reduction <add>, %62, %cst_31 [1] : vector<128x128xf32> to vector<128xf32>
    %64 = vector.shape_cast %63 : vector<128xf32> to vector<128x1xf32>
    %65 = tpu.reciprocal %64 {approx = true} : vector<128x1xf32> -> vector<128x1xf32>
    %66 = arith.mulf %64, %65 : vector<128x1xf32>
    %cst_32 = arith.constant 2.000000e+00 : f32
    %67 = vector.broadcast %cst_32 : f32 to vector<128x1xf32>
    %68 = arith.subf %67, %66 : vector<128x1xf32>
    %69 = arith.mulf %65, %68 : vector<128x1xf32>
    %70 = vector.broadcast %69 : vector<128x1xf32> to vector<128x128xf32>
    %71 = arith.mulf %62, %70 : vector<128x128xf32>
    %cst_33 = arith.constant dense<0.000000e+00> : vector<128x32xf32>
    %72 = tpu.matmul %71, %41, %cst_33 {dimension_numbers = #tpu.dot_dimension_numbers<[1], [0], [0], [1], [0, 0, 1, 1], [], []>} : vector<128x128xf32>, vector<128x32xf32>, vector<128x32xf32> -> vector<128x32xf32>
    %c2 = arith.constant 2 : index
    %c0_34 = arith.constant 0 : index
    %c0_35 = arith.constant 0 : index
    %73 = vector.load %arg1[%c2, %c0_34, %c0_35] : memref<3x32x32xf32, #tpu.memory_space<vmem>>, vector<1x32x32xf32>
    %74 = vector.shape_cast %73 : vector<1x32x32xf32> to vector<32x32xf32>
    %cst_36 = arith.constant dense<0.000000e+00> : vector<128x32xf32>
    %75 = tpu.matmul %72, %74, %cst_36 {dimension_numbers = #tpu.dot_dimension_numbers<[1], [0], [0], [1], [0, 0, 1, 1], [], []>} : vector<128x32xf32>, vector<32x32xf32>, vector<128x32xf32> -> vector<128x32xf32>
    %c2_37 = arith.constant 2 : index
    %c0_38 = arith.constant 0 : index
    %c0_39 = arith.constant 0 : index
    %76 = vector.load %arg2[%c2_37, %c0_38, %c0_39] : memref<3x2x32xf32, #tpu.memory_space<vmem>>, vector<1x2x32xf32>
    %77 = vector.shape_cast %76 : vector<1x2x32xf32> to vector<2x32xf32>
    %78 = vector.extract_strided_slice %77 {offsets = [0, 0], sizes = [1, 32], strides = [1, 1]} : vector<2x32xf32> to vector<1x32xf32>
    %cst_40 = arith.constant dense<0.000000e+00> : vector<128x1xf32>
    %79 = tpu.matmul %75, %78, %cst_40 {dimension_numbers = #tpu.dot_dimension_numbers<[1], [1], [0], [0], [0, 0, 1, 0], [], []>} : vector<128x32xf32>, vector<1x32xf32>, vector<128x1xf32> -> vector<128x1xf32>
    %80 = vector.extract_strided_slice %77 {offsets = [1, 0], sizes = [1, 32], strides = [1, 1]} : vector<2x32xf32> to vector<1x32xf32>
    %cst_41 = arith.constant dense<0.000000e+00> : vector<1x128xf32>
    %81 = tpu.matmul %80, %75, %cst_41 {dimension_numbers = #tpu.dot_dimension_numbers<[1], [1], [0], [0], [0, 0, 1, 0], [], []>} : vector<1x32xf32>, vector<128x32xf32>, vector<1x128xf32> -> vector<1x128xf32>
    %82 = vector.broadcast %79 : vector<128x1xf32> to vector<128x128xf32>
    %83 = vector.broadcast %81 : vector<1x128xf32> to vector<128x128xf32>
    %84 = arith.addf %82, %83 : vector<128x128xf32>
    %cst_42 = arith.constant 0.000000e+00 : f32
    %85 = vector.broadcast %cst_42 : f32 to vector<128x128xf32>
    %86 = arith.cmpf ogt, %84, %85 : vector<128x128xf32>
    %cst_43 = arith.constant 2.000000e-01 : f32
    %87 = vector.broadcast %cst_43 : f32 to vector<128x128xf32>
    %88 = arith.mulf %87, %84 : vector<128x128xf32>
    %89 = arith.select %86, %84, %88 : vector<128x128xi1>, vector<128x128xf32>
    %cst_44 = arith.constant 0.000000e+00 : f32
    %90 = vector.broadcast %cst_44 : f32 to vector<128x128xf32>
    %91 = arith.select %3, %89, %90 : vector<128x128xi1>, vector<128x128xf32>
    %cst_45 = arith.constant dense<0xFF800000> : vector<128xf32>
    %92 = vector.multi_reduction <maximumf>, %91, %cst_45 [1] : vector<128x128xf32> to vector<128xf32>
    %93 = vector.shape_cast %92 : vector<128xf32> to vector<128x1xf32>
    %94 = vector.broadcast %93 : vector<128x1xf32> to vector<128x128xf32>
    %95 = arith.subf %91, %94 : vector<128x128xf32>
    %96 = math.exp %95 : vector<128x128xf32>
    %cst_46 = arith.constant dense<0.000000e+00> : vector<128xf32>
    %97 = vector.multi_reduction <add>, %96, %cst_46 [1] : vector<128x128xf32> to vector<128xf32>
    %98 = vector.shape_cast %97 : vector<128xf32> to vector<128x1xf32>
    %99 = tpu.reciprocal %98 {approx = true} : vector<128x1xf32> -> vector<128x1xf32>
    %100 = arith.mulf %98, %99 : vector<128x1xf32>
    %cst_47 = arith.constant 2.000000e+00 : f32
    %101 = vector.broadcast %cst_47 : f32 to vector<128x1xf32>
    %102 = arith.subf %101, %100 : vector<128x1xf32>
    %103 = arith.mulf %99, %102 : vector<128x1xf32>
    %104 = vector.broadcast %103 : vector<128x1xf32> to vector<128x128xf32>
    %105 = arith.mulf %96, %104 : vector<128x128xf32>
    %cst_48 = arith.constant dense<0.000000e+00> : vector<128x32xf32>
    %106 = tpu.matmul %105, %75, %cst_48 {dimension_numbers = #tpu.dot_dimension_numbers<[1], [0], [0], [1], [0, 0, 1, 1], [], []>} : vector<128x128xf32>, vector<128x32xf32>, vector<128x32xf32> -> vector<128x32xf32>
    %c0_49 = arith.constant 0 : index
    %c0_50 = arith.constant 0 : index
    %107 = vector.load %arg4[%c0_49, %c0_50] : memref<128x32xf32, #tpu.memory_space<vmem>>, vector<128x32xf32>
    tpu.vector_store %arg4[%c0_49, %c0_50], %106 {strides = array<i32>} : memref<128x32xf32, #tpu.memory_space<vmem>>, vector<128x32xf32>,
    return
  }
}

</mosaic_0001>

<llo_original>
// kernel: own_gat_model_forward.1
$region0: #{own_gat_model_forward.1}
  #allocation0 [shape = 'u32[]', space=smem, size = 0x4, offset = 0x4, fixed_abs, tag = 'smem constant byte address 0x4 - core index']
  #allocation1 [shape = 'u32[144,128]{1,0:T(1,128)}', space=vmem, size = 0x12000, scoped, tag = 'internal scratch']
  %s0 = inlined_call_operand.vmem [shape: f32[128,32], index: 0, kind: input, shape index: {}]
  %s1 = inlined_call_operand.vmem [shape: f32[3,32,32], index: 1, kind: input, shape index: {}]
  %s2 = inlined_call_operand.vmem [shape: f32[3,2,32], index: 2, kind: input, shape index: {}]
  %s3 = inlined_call_operand.vmem [shape: s8[128,128], index: 3, kind: input, shape index: {}]
  %s4 = inlined_call_operand.vmem [shape: f32[128,32], index: 4, kind: output, shape index: {}]
  %s5 = sld [smem:[#allocation0]]
  $region26: #{own_gat_model_forward.1} parent=0
    _
  %s7 = ssub.s32 1, %s5
  %s8 = scalar_select 0, %s7, %s5
  // Predicated region
  $region2: #{own_gat_model_forward.1} parent=0 // pred_check
    _
  $region3: #{own_gat_model_forward.1} parent=0 // pred_check_branch
    %10 = sbr.rel (0) target = $region5
  $region4: #{own_gat_model_forward.1} parent=0 // pred_region
    _
  $region5: #{own_gat_model_forward.1} parent=0 // pred_fallthru
    _
  // Predicated region
  $region6: #{own_gat_model_forward.1} parent=0 // pred_check
    _
  $region7: #{own_gat_model_forward.1} parent=0 // pred_check_branch
    %12 = sbr.rel (0) target = $region9
  $region8: #{own_gat_model_forward.1} parent=0 // pred_region
    _
  $region9: #{own_gat_model_forward.1} parent=0 // pred_fallthru
    _
  // Predicated region
  $region10: #{own_gat_model_forward.1} parent=0 // pred_check
    _
  $region11: #{own_gat_model_forward.1} parent=0 // pred_check_branch
    %14 = sbr.rel (0) target = $region13
  $region12: #{own_gat_model_forward.1} parent=0 // pred_region
    _
  $region13: #{own_gat_model_forward.1} parent=0 // pred_fallthru
    _
  // Predicated region
  $region14: #{own_gat_model_forward.1} parent=0 // pred_check
    _
  $region15: #{own_gat_model_forward.1} parent=0 // pred_check_branch
    %16 = sbr.rel (0) target = $region17
  $region16: #{own_gat_model_forward.1} parent=0 // pred_region
    _
  $region17: #{own_gat_model_forward.1} parent=0 // pred_fallthru
    _
  %v17 = vld [vmem:[%s3] sm:$0xff]
  %v18 = vld [vmem:[%s3 + $0x8] sm:$0xff]
  %v19 = vld [vmem:[%s3 + $0x10] sm:$0xff]
  %v20 = vld [vmem:[%s3 + $0x18] sm:$0xff]
  %v21 = vunpack.c.0.s8 %v17
  %v22 = vunpack.c.1.s8 %v17
  %v23 = vunpack.c.2.s8 %v17
  %v24 = vunpack.c.3.s8 %v17
  %v25 = vunpack.c.0.s8 %v18
  %v26 = vunpack.c.1.s8 %v18
  %v27 = vunpack.c.2.s8 %v18
  %v28 = vunpack.c.3.s8 %v18
  %v29 = vunpack.c.0.s8 %v19
  %v30 = vunpack.c.1.s8 %v19
  %v31 = vunpack.c.2.s8 %v19
  %v32 = vunpack.c.3.s8 %v19
  %v33 = vunpack.c.0.s8 %v20
  %v34 = vunpack.c.1.s8 %v20
  %v35 = vunpack.c.2.s8 %v20
  %v36 = vunpack.c.3.s8 %v20
  %v37 = vcvt.s32.f32 %v21
  %v38 = vcvt.s32.f32 %v22
  %v39 = vcvt.s32.f32 %v23
  %v40 = vcvt.s32.f32 %v24
  %v41 = vcvt.s32.f32 %v25
  %v42 = vcvt.s32.f32 %v26
  %v43 = vcvt.s32.f32 %v27
  %v44 = vcvt.s32.f32 %v28
  %v45 = vcvt.s32.f32 %v29
  %v46 = vcvt.s32.f32 %v30
  %v47 = vcvt.s32.f32 %v31
  %v48 = vcvt.s32.f32 %v32
  %v49 = vcvt.s32.f32 %v33
  %v50 = vcvt.s32.f32 %v34
  %v51 = vcvt.s32.f32 %v35
  %v52 = vcvt.s32.f32 %v36
  %vm53 = vcmp.gt.f32.partialorder %v37, 0.0
  %vm54 = vcmp.gt.f32.partialorder %v38, 0.0
  %vm55 = vcmp.gt.f32.partialorder %v39, 0.0
  %vm56 = vcmp.gt.f32.partialorder %v40, 0.0
  %vm57 = vcmp.gt.f32.partialorder %v41, 0.0
  %vm58 = vcmp.gt.f32.partialorder %v42, 0.0
  %vm59 = vcmp.gt.f32.partialorder %v43, 0.0
  %vm60 = vcmp.gt.f32.partialorder %v44, 0.0
  %vm61 = vcmp.gt.f32.partialorder %v45, 0.0
  %vm62 = vcmp.gt.f32.partialorder %v46, 0.0
  %vm63 = vcmp.gt.f32.partialorder %v47, 0.0
  %vm64 = vcmp.gt.f32.partialorder %v48, 0.0
  %vm65 = vcmp.gt.f32.partialorder %v49, 0.0
  %vm66 = vcmp.gt.f32.partialorder %v50, 0.0
  %vm67 = vcmp.gt.f32.partialorder %v51, 0.0
  %vm68 = vcmp.gt.f32.partialorder %v52, 0.0
  %v69 = vld [vmem:[%s0] sm:$0xff]
  %v70 = vld [vmem:[%s0 + $0x8] sm:$0xff]
  %v71 = vld [vmem:[%s0 + $0x10] sm:$0xff]
  %v72 = vld [vmem:[%s0 + $0x18] sm:$0xff]
  %v73 = vld [vmem:[%s0 + $0x20] sm:$0xff]
  %v74 = vld [vmem:[%s0 + $0x28] sm:$0xff]
  %v75 = vld [vmem:[%s0 + $0x30] sm:$0xff]
  %v76 = vld [vmem:[%s0 + $0x38] sm:$0xff]
  %v77 = vld [vmem:[%s0 + $0x40] sm:$0xff]
  %v78 = vld [vmem:[%s0 + $0x48] sm:$0xff]
  %v79 = vld [vmem:[%s0 + $0x50] sm:$0xff]
  %v80 = vld [vmem:[%s0 + $0x58] sm:$0xff]
  %v81 = vld [vmem:[%s0 + $0x60] sm:$0xff]
  %v82 = vld [vmem:[%s0 + $0x68] sm:$0xff]
  %v83 = vld [vmem:[%s0 + $0x70] sm:$0xff]
  %v84 = vld [vmem:[%s0 + $0x78] sm:$0xff]
  %v85 = vld [vmem:[%s1] sm:$0xff]
  %v86 = vld [vmem:[%s1 + $0x8] sm:$0xff]
  %v87 = vld [vmem:[%s1 + $0x10] sm:$0xff]
  %v88 = vld [vmem:[%s1 + $0x18] sm:$0xff]
  %vm89 = vcmask 261120
  %v91 = vsel %vm89, %v69, 0
  %v94 = vsel %vm89, %v70, 0
  %v97 = vsel %vm89, %v71, 0
  %v100 = vsel %vm89, %v72, 0
  %v103 = vsel %vm89, %v73, 0
  %v106 = vsel %vm89, %v74, 0
  %v109 = vsel %vm89, %v75, 0
  %v112 = vsel %vm89, %v76, 0
  %v115 = vsel %vm89, %v77, 0
  %v118 = vsel %vm89, %v78, 0
  %v121 = vsel %vm89, %v79, 0
  %v124 = vsel %vm89, %v80, 0
  %v127 = vsel %vm89, %v81, 0
  %v130 = vsel %vm89, %v82, 0
  %v133 = vsel %vm89, %v83, 0
  %v136 = vsel %vm89, %v84, 0
  %138 = vmatprep.subr.mxu0 0.0
  %139 = vmatpush1.msra.mxu0 %v85
  %140 = vmatprep.subr.mxu0 0.0
  %141 = vmatpush1.msra.mxu0 %v86
  %142 = vmatprep.subr.mxu0 0.0
  %143 = vmatpush1.msra.mxu0 %v87
  %144 = vmatprep.subr.mxu0 0.0
  %145 = vmatpush1.msra.mxu0 %v88
  %146 = vmatprep.subr.mxu0 0.0
  %147 = vmatpush1.msra.mxu0 0.0
  %148 = vmatprep.subr.mxu0 0.0
  %149 = vmatpush1.msra.mxu0 0.0
  %150 = vmatprep.subr.mxu0 0.0
  %151 = vmatpush1.msra.mxu0 0.0
  %152 = vmatprep.subr.mxu0 0.0
  %153 = vmatpush1.msra.mxu0 0.0
  %154 = vmatprep.subr.mxu0 0.0
  %155 = vmatpush1.msra.mxu0 0.0
  %156 = vmatprep.subr.mxu0 0.0
  %157 = vmatpush1.msra.mxu0 0.0
  %158 = vmatprep.subr.mxu0 0.0
  %159 = vmatpush1.msra.mxu0 0.0
  %160 = vmatprep.subr.mxu0 0.0
  %161 = vmatpush1.msra.mxu0 0.0
  %162 = vmatprep.subr.mxu0 0.0
  %163 = vmatpush1.msra.mxu0 0.0
  %164 = vmatprep.subr.mxu0 0.0
  %165 = vmatpush1.msra.mxu0 0.0
  %166 = vmatprep.subr.mxu0 0.0
  %167 = vmatpush1.msra.mxu0 0.0
  %168 = vmatprep.subr.mxu0 0.0
  %169 = vmatpush1.msra.mxu0 0.0
  %170 = vmatprep.subr.mxu0 0.0
  %171 = vmatpush1.msra.mxu0 0.0
  %172 = vmatprep.subr.mxu0 0.0
  %173 = vmatpush1.msra.mxu0 0.0
  %174 = vmatprep.subr.mxu0 0.0
  %175 = vmatpush1.msra.mxu0 0.0
  %176 = vmatprep.subr.mxu0 0.0
  %177 = vmatpush1.msra.mxu0 0.0
  %178 = vmatprep.subr.mxu0 0.0
  %179 = vmatpush1.msra.mxu0 0.0
  %180 = vmatprep.subr.mxu0 0.0
  %181 = vmatpush1.msra.mxu0 0.0
  %182 = vmatprep.subr.mxu0 0.0
  %183 = vmatpush1.msra.mxu0 0.0
  %184 = vmatprep.subr.mxu0 0.0
  %185 = vmatpush1.msra.mxu0 0.0
  %186 = vmatprep.subr.mxu0 0.0
  %187 = vmatpush1.msra.mxu0 0.0
  %188 = vmatprep.subr.mxu0 0.0
  %189 = vmatpush1.msra.mxu0 0.0
  %190 = vmatprep.subr.mxu0 0.0
  %191 = vmatpush1.msra.mxu0 0.0
  %192 = vmatprep.subr.mxu0 0.0
  %193 = vmatpush1.msra.mxu0 0.0
  %194 = vmatprep.subr.mxu0 0.0
  %195 = vmatpush1.msra.mxu0 0.0
  %196 = vmatprep.subr.mxu0 0.0
  %197 = vmatpush1.msra.mxu0 0.0
  %198 = vmatprep.subr.mxu0 0.0
  %199 = vmatpush1.msra.mxu0 0.0
  %200 = vmatprep.subr.mxu0 0.0
  %201 = vmatpush1.msra.mxu0 0.0
  %202 = vmatprep.mubr.f32.mxu0 0.0
  %203 = vmatmul.mubr.f32.gmra.mrb[0].mxu0 %v91
  %v204 = vpop.f32.mrb[0].mxu0
  %v205 = vadd.f32 0.0, %v204
  %v206 = vpop.f32.mrb[0].mxu0
  %207 = vmatprep.mubr.f32.mxu0 0.0
  %208 = vmatmul.mubr.f32.gmra.mrb[0].mxu0 %v94
  %v209 = vpop.f32.mrb[0].mxu0
  %v210 = vadd.f32 0.0, %v209
  %v211 = vpop.f32.mrb[0].mxu0
  %212 = vmatprep.mubr.f32.mxu0 0.0
  %213 = vmatmul.mubr.f32.gmra.mrb[0].mxu0 %v97
  %v214 = vpop.f32.mrb[0].mxu0
  %v215 = vadd.f32 0.0, %v214
  %v216 = vpop.f32.mrb[0].mxu0
  %217 = vmatprep.mubr.f32.mxu0 0.0
  %218 = vmatmul.mubr.f32.gmra.mrb[0].mxu0 %v100
  %v219 = vpop.f32.mrb[0].mxu0
  %v220 = vadd.f32 0.0, %v219
  %v221 = vpop.f32.mrb[0].mxu0
  %222 = vmatprep.mubr.f32.mxu0 0.0
  %223 = vmatmul.mubr.f32.gmra.mrb[0].mxu0 %v103
  %v224 = vpop.f32.mrb[0].mxu0
  %v225 = vadd.f32 0.0, %v224
  %v226 = vpop.f32.mrb[0].mxu0
  %227 = vmatprep.mubr.f32.mxu0 0.0
  %228 = vmatmul.mubr.f32.gmra.mrb[0].mxu0 %v106
  %v229 = vpop.f32.mrb[0].mxu0
  %v230 = vadd.f32 0.0, %v229
  %v231 = vpop.f32.mrb[0].mxu0
  %232 = vmatprep.mubr.f32.mxu0 0.0
  %233 = vmatmul.mubr.f32.gmra.mrb[0].mxu0 %v109
  %v234 = vpop.f32.mrb[0].mxu0
  %v235 = vadd.f32 0.0, %v234
  %v236 = vpop.f32.mrb[0].mxu0
  %237 = vmatprep.mubr.f32.mxu0 0.0
  %238 = vmatmul.mubr.f32.gmra.mrb[0].mxu0 %v112
  %v239 = vpop.f32.mrb[0].mxu0
  %v240 = vadd.f32 0.0, %v239
  %v241 = vpop.f32.mrb[0].mxu0
  %242 = vmatprep.mubr.f32.mxu0 0.0
  %243 = vmatmul.mubr.f32.gmra.mrb[0].mxu0 %v115
  %v244 = vpop.f32.mrb[0].mxu0
  %v245 = vadd.f32 0.0, %v244
  %v246 = vpop.f32.mrb[0].mxu0
  %247 = vmatprep.mubr.f32.mxu0 0.0
  %248 = vmatmul.mubr.f32.gmra.mrb[0].mxu0 %v118
  %v249 = vpop.f32.mrb[0].mxu0
  %v250 = vadd.f32 0.0, %v249
  %v251 = vpop.f32.mrb[0].mxu0
  %252 = vmatprep.mubr.f32.mxu0 0.0
  %253 = vmatmul.mubr.f32.gmra.mrb[0].mxu0 %v121
  %v254 = vpop.f32.mrb[0].mxu0
  %v255 = vadd.f32 0.0, %v254
  %v256 = vpop.f32.mrb[0].mxu0
  %257 = vmatprep.mubr.f32.mxu0 0.0
  %258 = vmatmul.mubr.f32.gmra.mrb[0].mxu0 %v124
  %v259 = vpop.f32.mrb[0].mxu0
  %v260 = vadd.f32 0.0, %v259
  %v261 = vpop.f32.mrb[0].mxu0
  %262 = vmatprep.mubr.f32.mxu0 0.0
  %263 = vmatmul.mubr.f32.gmra.mrb[0].mxu0 %v127
  %v264 = vpop.f32.mrb[0].mxu0
  %v265 = vadd.f32 0.0, %v264
  %v266 = vpop.f32.mrb[0].mxu0
  %267 = vmatprep.mubr.f32.mxu0 0.0
  %268 = vmatmul.mubr.f32.gmra.mrb[0].mxu0 %v130
  %v269 = vpop.f32.mrb[0].mxu0
  %v270 = vadd.f32 0.0, %v269
  %v271 = vpop.f32.mrb[0].mxu0
  %272 = vmatprep.mubr.f32.mxu0 0.0
  %273 = vmatmul.mubr.f32.gmra.mrb[0].mxu0 %v133
  %v274 = vpop.f32.mrb[0].mxu0
  %v275 = vadd.f32 0.0, %v274
  %v276 = vpop.f32.mrb[0].mxu0
  %277 = vmatprep.mubr.f32.mxu0 0.0
  %278 = vmatmul.mubr.f32.gmra.mrb[0].mxu0 %v136
  %v279 = vpop.f32.mrb[0].mxu0
  %v280 = vadd.f32 0.0, %v279
  %v281 = vpop.f32.mrb[0].mxu0
  %282 = vdwg.mxu0
  %v283 = vld [vmem:[%s2] sm:$0x3]
  %v284 = vlaneseq
  %v285 = vshrl.u32 %v284, 7
  %v286 = vsub.s32 0, %v285
  %v287 = vrot.slane %v283, %v286
  %v288 = vmul.f32 %v205, %v287
  %v289 = vmul.f32 %v210, %v287
  %v290 = vmul.f32 %v215, %v287
  %v291 = vmul.f32 %v220, %v287
  %v292 = vmul.f32 %v225, %v287
  %v293 = vmul.f32 %v230, %v287
  %v294 = vmul.f32 %v235, %v287
  %v295 = vmul.f32 %v240, %v287
  %v296 = vmul.f32 %v245, %v287
  %v297 = vmul.f32 %v250, %v287
  %v298 = vmul.f32 %v255, %v287
  %v299 = vmul.f32 %v260, %v287
  %v300 = vmul.f32 %v265, %v287
  %v301 = vmul.f32 %v270, %v287
  %v302 = vmul.f32 %v275, %v287
  %v303 = vmul.f32 %v280, %v287
  %v304 = vsel %vm89, %v288, 0.0
  %305 = vadd.xlane.f32.xlu0 %v304
  %v306 = vpop.xlane.xlu0 %305
  %v307 = vsel %vm89, %v289, 0.0
  %308 = vadd.xlane.f32.xlu0 %v307
  %v309 = vpop.xlane.xlu0 %308
  %v310 = vsel %vm89, %v290, 0.0
  %311 = vadd.xlane.f32.xlu0 %v310
  %v312 = vpop.xlane.xlu0 %311
  %v313 = vsel %vm89, %v291, 0.0
  %314 = vadd.xlane.f32.xlu0 %v313
  %v315 = vpop.xlane.xlu0 %314
  %v316 = vsel %vm89, %v292, 0.0
  %317 = vadd.xlane.f32.xlu0 %v316
  %v318 = vpop.xlane.xlu0 %317
  %v319 = vsel %vm89, %v293, 0.0
  %320 = vadd.xlane.f32.xlu0 %v319
  %v321 = vpop.xlane.xlu0 %320
  %v322 = vsel %vm89, %v294, 0.0
  %323 = vadd.xlane.f32.xlu0 %v322
  %v324 = vpop.xlane.xlu0 %323
  %v325 = vsel %vm89, %v295, 0.0
  %326 = vadd.xlane.f32.xlu0 %v325
  %v327 = vpop.xlane.xlu0 %326
  %v328 = vsel %vm89, %v296, 0.0
  %329 = vadd.xlane.f32.xlu0 %v328
  %v330 = vpop.xlane.xlu0 %329
  %v331 = vsel %vm89, %v297, 0.0
  %332 = vadd.xlane.f32.xlu0 %v331
  %v333 = vpop.xlane.xlu0 %332
  %v334 = vsel %vm89, %v298, 0.0
  %335 = vadd.xlane.f32.xlu0 %v334
  %v336 = vpop.xlane.xlu0 %335
  %v337 = vsel %vm89, %v299, 0.0
  %338 = vadd.xlane.f32.xlu0 %v337
  %v339 = vpop.xlane.xlu0 %338
  %v340 = vsel %vm89, %v300, 0.0
  %341 = vadd.xlane.f32.xlu0 %v340
  %v342 = vpop.xlane.xlu0 %341
  %v343 = vsel %vm89, %v301, 0.0
  %344 = vadd.xlane.f32.xlu0 %v343
  %v345 = vpop.xlane.xlu0 %344
  %v346 = vsel %vm89, %v302, 0.0
  %347 = vadd.xlane.f32.xlu0 %v346
  %v348 = vpop.xlane.xlu0 %347
  %v349 = vsel %vm89, %v303, 0.0
  %350 = vadd.xlane.f32.xlu0 %v349
  %v351 = vpop.xlane.xlu0 %350
  %v353 = vrot.slane %v283, 1
  %v354 = vsel %vm89, %v353, 0
  %v357 = vsel %vm89, %v205, 0
  %v360 = vsel %vm89, %v210, 0
  %v363 = vsel %vm89, %v215, 0
  %v366 = vsel %vm89, %v220, 0
  %v369 = vsel %vm89, %v225, 0
  %v372 = vsel %vm89, %v230, 0
  %v375 = vsel %vm89, %v235, 0
  %v378 = vsel %vm89, %v240, 0
  %v381 = vsel %vm89, %v245, 0
  %v384 = vsel %vm89, %v250, 0
  %v387 = vsel %vm89, %v255, 0
  %v390 = vsel %vm89, %v260, 0
  %v393 = vsel %vm89, %v265, 0
  %v396 = vsel %vm89, %v270, 0
  %v399 = vsel %vm89, %v275, 0
  %v402 = vsel %vm89, %v280, 0
  %404 = vmatprep.subr.mxu0 0.0
  %405 = vmatpush1.xpose.msra.mxu0 %v357
  %406 = vmatprep.subr.mxu0 0.0
  %407 = vmatpush1.xpose.msra.mxu0 %v360
  %408 = vmatprep.subr.mxu0 0.0
  %409 = vmatpush1.xpose.msra.mxu0 %v363
  %410 = vmatprep.subr.mxu0 0.0
  %411 = vmatpush1.xpose.msra.mxu0 %v366
  %412 = vmatprep.subr.mxu0 0.0
  %413 = vmatpush1.xpose.msra.mxu0 %v369
  %414 = vmatprep.subr.mxu0 0.0
  %415 = vmatpush1.xpose.msra.mxu0 %v372
  %416 = vmatprep.subr.mxu0 0.0
  %417 = vmatpush1.xpose.msra.mxu0 %v375
  %418 = vmatprep.subr.mxu0 0.0
  %419 = vmatpush1.xpose.msra.mxu0 %v378
  %420 = vmatprep.subr.mxu0 0.0
  %421 = vmatpush1.xpose.msra.mxu0 %v381
  %422 = vmatprep.subr.mxu0 0.0
  %423 = vmatpush1.xpose.msra.mxu0 %v384
  %424 = vmatprep.subr.mxu0 0.0
  %425 = vmatpush1.xpose.msra.mxu0 %v387
  %426 = vmatprep.subr.mxu0 0.0
  %427 = vmatpush1.xpose.msra.mxu0 %v390
  %428 = vmatprep.subr.mxu0 0.0
  %429 = vmatpush1.xpose.msra.mxu0 %v393
  %430 = vmatprep.subr.mxu0 0.0
  %431 = vmatpush1.xpose.msra.mxu0 %v396
  %432 = vmatprep.subr.mxu0 0.0
  %433 = vmatpush1.xpose.msra.mxu0 %v399
  %434 = vmatprep.subr.mxu0 0.0
  %435 = vmatpush1.xpose.msra.mxu0 %v402
  %436 = vmatprep.subr.mxu0 0.0
  %437 = vmatpush1.xpose.msra.mxu0 0.0
  %438 = vmatprep.subr.mxu0 0.0
  %439 = vmatpush1.xpose.msra.mxu0 0.0
  %440 = vmatprep.subr.mxu0 0.0
  %441 = vmatpush1.xpose.msra.mxu0 0.0
  %442 = vmatprep.subr.mxu0 0.0
  %443 = vmatpush1.xpose.msra.mxu0 0.0
  %444 = vmatprep.subr.mxu0 0.0
  %445 = vmatpush1.xpose.msra.mxu0 0.0
  %446 = vmatprep.subr.mxu0 0.0
  %447 = vmatpush1.xpose.msra.mxu0 0.0
  %448 = vmatprep.subr.mxu0 0.0
  %449 = vmatpush1.xpose.msra.mxu0 0.0
  %450 = vmatprep.subr.mxu0 0.0
  %451 = vmatpush1.xpose.msra.mxu0 0.0
  %452 = vmatprep.subr.mxu0 0.0
  %453 = vmatpush1.xpose.msra.mxu0 0.0
  %454 = vmatprep.subr.mxu0 0.0
  %455 = vmatpush1.xpose.msra.mxu0 0.0
  %456 = vmatprep.subr.mxu0 0.0
  %457 = vmatpush1.xpose.msra.mxu0 0.0
  %458 = vmatprep.subr.mxu0 0.0
  %459 = vmatpush1.xpose.msra.mxu0 0.0
  %460 = vmatprep.subr.mxu0 0.0
  %461 = vmatpush1.xpose.msra.mxu0 0.0
  %462 = vmatprep.subr.mxu0 0.0
  %463 = vmatpush1.xpose.msra.mxu0 0.0
  %464 = vmatprep.subr.mxu0 0.0
  %465 = vmatpush1.xpose.msra.mxu0 0.0
  %466 = vmatprep.subr.mxu0 0.0
  %467 = vmatpush1.xpose.msra.mxu0 0.0
  %468 = vmatprep.mubr.f32.mxu0 0.0
  %469 = vmatmul.mubr.f32.gmra.mrb[0].mxu0 %v354
  %v470 = vpop.f32.mrb[0].mxu0
  %v471 = vadd.f32 0.0, %v470
  %v472 = vpop.f32.mrb[0].mxu0
  %473 = vdwg.mxu0
  %v474 = vlaneseq
  %v475 = vshrl.u32 %v474, 7
  %v476 = vsub.s32 0, %v475
  %v477 = vrot.slane %v471, %v476
  %v478 = vadd.f32 %v306, %v477
  %v479 = vadd.f32 %v309, %v477
  %v480 = vadd.f32 %v312, %v477
  %v481 = vadd.f32 %v315, %v477
  %v482 = vadd.f32 %v318, %v477
  %v483 = vadd.f32 %v321, %v477
  %v484 = vadd.f32 %v324, %v477
  %v485 = vadd.f32 %v327, %v477
  %v486 = vadd.f32 %v330, %v477
  %v487 = vadd.f32 %v333, %v477
  %v488 = vadd.f32 %v336, %v477
  %v489 = vadd.f32 %v339, %v477
  %v490 = vadd.f32 %v342, %v477
  %v491 = vadd.f32 %v345, %v477
  %v492 = vadd.f32 %v348, %v477
  %v493 = vadd.f32 %v351, %v477
  %vm494 = vcmp.gt.f32.partialorder %v478, 0.0
  %vm495 = vcmp.gt.f32.partialorder %v479, 0.0
  %vm496 = vcmp.gt.f32.partialorder %v480, 0.0
  %vm497 = vcmp.gt.f32.partialorder %v481, 0.0
  %vm498 = vcmp.gt.f32.partialorder %v482, 0.0
  %vm499 = vcmp.gt.f32.partialorder %v483, 0.0
  %vm500 = vcmp.gt.f32.partialorder %v484, 0.0
  %vm501 = vcmp.gt.f32.partialorder %v485, 0.0
  %vm502 = vcmp.gt.f32.partialorder %v486, 0.0
  %vm503 = vcmp.gt.f32.partialorder %v487, 0.0
  %vm504 = vcmp.gt.f32.partialorder %v488, 0.0
  %vm505 = vcmp.gt.f32.partialorder %v489, 0.0
  %vm506 = vcmp.gt.f32.partialorder %v490, 0.0
  %vm507 = vcmp.gt.f32.partialorder %v491, 0.0
  %vm508 = vcmp.gt.f32.partialorder %v492, 0.0
  %vm509 = vcmp.gt.f32.partialorder %v493, 0.0
  %v510 = vmul.f32 %v478, 0.2
  %v511 = vmul.f32 %v479, 0.2
  %v512 = vmul.f32 %v480, 0.2
  %v513 = vmul.f32 %v481, 0.2
  %v514 = vmul.f32 %v482, 0.2
  %v515 = vmul.f32 %v483, 0.2
  %v516 = vmul.f32 %v484, 0.2
  %v517 = vmul.f32 %v485, 0.2
  %v518 = vmul.f32 %v486, 0.2
  %v519 = vmul.f32 %v487, 0.2
  %v520 = vmul.f32 %v488, 0.2
  %v521 = vmul.f32 %v489, 0.2
  %v522 = vmul.f32 %v490, 0.2
  %v523 = vmul.f32 %v491, 0.2
  %v524 = vmul.f32 %v492, 0.2
  %v525 = vmul.f32 %v493, 0.2
  %v526 = vsel %vm494, %v478, %v510
  %v527 = vsel %vm495, %v479, %v511
  %v528 = vsel %vm496, %v480, %v512
  %v529 = vsel %vm497, %v481, %v513
  %v530 = vsel %vm498, %v482, %v514
  %v531 = vsel %vm499, %v483, %v515
  %v532 = vsel %vm500, %v484, %v516
  %v533 = vsel %vm501, %v485, %v517
  %v534 = vsel %vm502, %v486, %v518
  %v535 = vsel %vm503, %v487, %v519
  %v536 = vsel %vm504, %v488, %v520
  %v537 = vsel %vm505, %v489, %v521
  %v538 = vsel %vm506, %v490, %v522
  %v539 = vsel %vm507, %v491, %v523
  %v540 = vsel %vm508, %v492, %v524
  %v541 = vsel %vm509, %v493, %v525
  %v542 = vsel %vm53, %v526, 0.0
  %v543 = vsel %vm54, %v527, 0.0
  %v544 = vsel %vm55, %v528, 0.0
  %v545 = vsel %vm56, %v529, 0.0
  %v546 = vsel %vm57, %v530, 0.0
  %v547 = vsel %vm58, %v531, 0.0
  %v548 = vsel %vm59, %v532, 0.0
  %v549 = vsel %vm60, %v533, 0.0
  %v550 = vsel %vm61, %v534, 0.0
  %v551 = vsel %vm62, %v535, 0.0
  %v552 = vsel %vm63, %v536, 0.0
  %v553 = vsel %vm64, %v537, 0.0
  %v554 = vsel %vm65, %v538, 0.0
  %v555 = vsel %vm66, %v539, 0.0
  %v556 = vsel %vm67, %v540, 0.0
  %v557 = vsel %vm68, %v541, 0.0
  %558 = vmax.xlane.f32.xlu0 %v542
  %v559 = vpop.xlane.xlu0 %558
  %560 = vmax.xlane.f32.xlu0 %v543
  %v561 = vpop.xlane.xlu0 %560
  %562 = vmax.xlane.f32.xlu0 %v544
  %v563 = vpop.xlane.xlu0 %562
  %564 = vmax.xlane.f32.xlu0 %v545
  %v565 = vpop.xlane.xlu0 %564
  %566 = vmax.xlane.f32.xlu0 %v546
  %v567 = vpop.xlane.xlu0 %566
  %568 = vmax.xlane.f32.xlu0 %v547
  %v569 = vpop.xlane.xlu0 %568
  %570 = vmax.xlane.f32.xlu0 %v548
  %v571 = vpop.xlane.xlu0 %570
  %572 = vmax.xlane.f32.xlu0 %v549
  %v573 = vpop.xlane.xlu0 %572
  %574 = vmax.xlane.f32.xlu0 %v550
  %v575 = vpop.xlane.xlu0 %574
  %576 = vmax.xlane.f32.xlu0 %v551
  %v577 = vpop.xlane.xlu0 %576
  %578 = vmax.xlane.f32.xlu0 %v552
  %v579 = vpop.xlane.xlu0 %578
  %580 = vmax.xlane.f32.xlu0 %v553
  %v581 = vpop.xlane.xlu0 %580
  %582 = vmax.xlane.f32.xlu0 %v554
  %v583 = vpop.xlane.xlu0 %582
  %584 = vmax.xlane.f32.xlu0 %v555
  %v585 = vpop.xlane.xlu0 %584
  %586 = vmax.xlane.f32.xlu0 %v556
  %v587 = vpop.xlane.xlu0 %586
  %588 = vmax.xlane.f32.xlu0 %v557
  %v589 = vpop.xlane.xlu0 %588
  %v590 = vsub.f32 %v542, %v559
  %v591 = vsub.f32 %v543, %v561
  %v592 = vsub.f32 %v544, %v563
  %v593 = vsub.f32 %v545, %v565
  %v594 = vsub.f32 %v546, %v567
  %v595 = vsub.f32 %v547, %v569
  %v596 = vsub.f32 %v548, %v571
  %v597 = vsub.f32 %v549, %v573
  %v598 = vsub.f32 %v550, %v575
  %v599 = vsub.f32 %v551, %v577
  %v600 = vsub.f32 %v552, %v579
  %v601 = vsub.f32 %v553, %v581
  %v602 = vsub.f32 %v554, %v583
  %v603 = vsub.f32 %v555, %v585
  %v604 = vsub.f32 %v556, %v587
  %v605 = vsub.f32 %v557, %v589
  %v606 = vmul.f32 %v590, 1.442695
  %v607 = vpow.pop %v606
  %v608 = vmul.f32 %v591, 1.442695
  %v609 = vpow.pop %v608
  %v610 = vmul.f32 %v592, 1.442695
  %v611 = vpow.pop %v610
  %v612 = vmul.f32 %v593, 1.442695
  %v613 = vpow.pop %v612
  %v614 = vmul.f32 %v594, 1.442695
  %v615 = vpow.pop %v614
  %v616 = vmul.f32 %v595, 1.442695
  %v617 = vpow.pop %v616
  %v618 = vmul.f32 %v596, 1.442695
  %v619 = vpow.pop %v618
  %v620 = vmul.f32 %v597, 1.442695
  %v621 = vpow.pop %v620
  %v622 = vmul.f32 %v598, 1.442695
  %v623 = vpow.pop %v622
  %v624 = vmul.f32 %v599, 1.442695
  %v625 = vpow.pop %v624
  %v626 = vmul.f32 %v600, 1.442695
  %v627 = vpow.pop %v626
  %v628 = vmul.f32 %v601, 1.442695
  %v629 = vpow.pop %v628
  %v630 = vmul.f32 %v602, 1.442695
  %v631 = vpow.pop %v630
  %v632 = vmul.f32 %v603, 1.442695
  %v633 = vpow.pop %v632
  %v634 = vmul.f32 %v604, 1.442695
  %v635 = vpow.pop %v634
  %v636 = vmul.f32 %v605, 1.442695
  %v637 = vpow.pop %v636
  %638 = vadd.xlane.f32.xlu0 %v607
  %v639 = vpop.xlane.xlu0 %638
  %640 = vadd.xlane.f32.xlu0 %v609
  %v641 = vpop.xlane.xlu0 %640
  %642 = vadd.xlane.f32.xlu0 %v611
  %v643 = vpop.xlane.xlu0 %642
  %644 = vadd.xlane.f32.xlu0 %v613
  %v645 = vpop.xlane.xlu0 %644
  %646 = vadd.xlane.f32.xlu0 %v615
  %v647 = vpop.xlane.xlu0 %646
  %648 = vadd.xlane.f32.xlu0 %v617
  %v649 = vpop.xlane.xlu0 %648
  %650 = vadd.xlane.f32.xlu0 %v619
  %v651 = vpop.xlane.xlu0 %650
  %652 = vadd.xlane.f32.xlu0 %v621
  %v653 = vpop.xlane.xlu0 %652
  %654 = vadd.xlane.f32.xlu0 %v623
  %v655 = vpop.xlane.xlu0 %654
  %656 = vadd.xlane.f32.xlu0 %v625
  %v657 = vpop.xlane.xlu0 %656
  %658 = vadd.xlane.f32.xlu0 %v627
  %v659 = vpop.xlane.xlu0 %658
  %660 = vadd.xlane.f32.xlu0 %v629
  %v661 = vpop.xlane.xlu0 %660
  %662 = vadd.xlane.f32.xlu0 %v631
  %v663 = vpop.xlane.xlu0 %662
  %664 = vadd.xlane.f32.xlu0 %v633
  %v665 = vpop.xlane.xlu0 %664
  %666 = vadd.xlane.f32.xlu0 %v635
  %v667 = vpop.xlane.xlu0 %666
  %668 = vadd.xlane.f32.xlu0 %v637
  %v669 = vpop.xlane.xlu0 %668
  %v670 = vrcp.pop %v639
  %v671 = vrcp.pop %v641
  %v672 = vrcp.pop %v643
  %v673 = vrcp.pop %v645
  %v674 = vrcp.pop %v647
  %v675 = vrcp.pop %v649
  %v676 = vrcp.pop %v651
  %v677 = vrcp.pop %v653
  %v678 = vrcp.pop %v655
  %v679 = vrcp.pop %v657
  %v680 = vrcp.pop %v659
  %v681 = vrcp.pop %v661
  %v682 = vrcp.pop %v663
  %v683 = vrcp.pop %v665
  %v684 = vrcp.pop %v667
  %v685 = vrcp.pop %v669
  %v686 = vmul.f32 %v639, %v670
  %v687 = vmul.f32 %v641, %v671
  %v688 = vmul.f32 %v643, %v672
  %v689 = vmul.f32 %v645, %v673
  %v690 = vmul.f32 %v647, %v674
  %v691 = vmul.f32 %v649, %v675
  %v692 = vmul.f32 %v651, %v676
  %v693 = vmul.f32 %v653, %v677
  %v694 = vmul.f32 %v655, %v678
  %v695 = vmul.f32 %v657, %v679
  %v696 = vmul.f32 %v659, %v680
  %v697 = vmul.f32 %v661, %v681
  %v698 = vmul.f32 %v663, %v682
  %v699 = vmul.f32 %v665, %v683
  %v700 = vmul.f32 %v667, %v684
  %v701 = vmul.f32 %v669, %v685
  %v702 = vsub.f32 2.0, %v686
  %v703 = vsub.f32 2.0, %v687
  %v704 = vsub.f32 2.0, %v688
  %v705 = vsub.f32 2.0, %v689
  %v706 = vsub.f32 2.0, %v690
  %v707 = vsub.f32 2.0, %v691
  %v708 = vsub.f32 2.0, %v692
  %v709 = vsub.f32 2.0, %v693
  %v710 = vsub.f32 2.0, %v694
  %v711 = vsub.f32 2.0, %v695
  %v712 = vsub.f32 2.0, %v696
  %v713 = vsub.f32 2.0, %v697
  %v714 = vsub.f32 2.0, %v698
  %v715 = vsub.f32 2.0, %v699
  %v716 = vsub.f32 2.0, %v700
  %v717 = vsub.f32 2.0, %v701
  %v718 = vmul.f32 %v670, %v702
  %v719 = vmul.f32 %v671, %v703
  %v720 = vmul.f32 %v672, %v704
  %v721 = vmul.f32 %v673, %v705
  %v722 = vmul.f32 %v674, %v706
  %v723 = vmul.f32 %v675, %v707
  %v724 = vmul.f32 %v676, %v708
  %v725 = vmul.f32 %v677, %v709
  %v726 = vmul.f32 %v678, %v710
  %v727 = vmul.f32 %v679, %v711
  %v728 = vmul.f32 %v680, %v712
  %v729 = vmul.f32 %v681, %v713
  %v730 = vmul.f32 %v682, %v714
  %v731 = vmul.f32 %v683, %v715
  %v732 = vmul.f32 %v684, %v716
  %v733 = vmul.f32 %v685, %v717
  %v734 = vmul.f32 %v607, %v718
  %v735 = vmul.f32 %v609, %v719
  %v736 = vmul.f32 %v611, %v720
  %v737 = vmul.f32 %v613, %v721
  %v738 = vmul.f32 %v615, %v722
  %v739 = vmul.f32 %v617, %v723
  %v740 = vmul.f32 %v619, %v724
  %v741 = vmul.f32 %v621, %v725
  %v742 = vmul.f32 %v623, %v726
  %v743 = vmul.f32 %v625, %v727
  %v744 = vmul.f32 %v627, %v728
  %v745 = vmul.f32 %v629, %v729
  %v746 = vmul.f32 %v631, %v730
  %v747 = vmul.f32 %v633, %v731
  %v748 = vmul.f32 %v635, %v732
  %v749 = vmul.f32 %v637, %v733
  %750 = vmatprep.subr.mxu0 0.0
  %751 = vmatpush1.msra.mxu0 %v205
  %752 = vmatprep.subr.mxu0 0.0
  %753 = vmatpush1.msra.mxu0 %v210
  %754 = vmatprep.subr.mxu0 0.0
  %755 = vmatpush1.msra.mxu0 %v215
  %756 = vmatprep.subr.mxu0 0.0
  %757 = vmatpush1.msra.mxu0 %v220
  %758 = vmatprep.subr.mxu0 0.0
  %759 = vmatpush1.msra.mxu0 %v225
  %760 = vmatprep.subr.mxu0 0.0
  %761 = vmatpush1.msra.mxu0 %v230
  %762 = vmatprep.subr.mxu0 0.0
  %763 = vmatpush1.msra.mxu0 %v235
  %764 = vmatprep.subr.mxu0 0.0
  %765 = vmatpush1.msra.mxu0 %v240
  %766 = vmatprep.subr.mxu0 0.0
  %767 = vmatpush1.msra.mxu0 %v245
  %768 = vmatprep.subr.mxu0 0.0
  %769 = vmatpush1.msra.mxu0 %v250
  %770 = vmatprep.subr.mxu0 0.0
  %771 = vmatpush1.msra.mxu0 %v255
  %772 = vmatprep.subr.mxu0 0.0
  %773 = vmatpush1.msra.mxu0 %v260
  %774 = vmatprep.subr.mxu0 0.0
  %775 = vmatpush1.msra.mxu0 %v265
  %776 = vmatprep.subr.mxu0 0.0
  %777 = vmatpush1.msra.mxu0 %v270
  %778 = vmatprep.subr.mxu0 0.0
  %779 = vmatpush1.msra.mxu0 %v275
  %780 = vmatprep.subr.mxu0 0.0
  %781 = vmatpush1.msra.mxu0 %v280
  %782 = vmatprep.subr.mxu0 0.0
  %783 = vmatpush1.msra.mxu0 0.0
  %784 = vmatprep.subr.mxu0 0.0
  %785 = vmatpush1.msra.mxu0 0.0
  %786 = vmatprep.subr.mxu0 0.0
  %787 = vmatpush1.msra.mxu0 0.0
  %788 = vmatprep.subr.mxu0 0.0
  %789 = vmatpush1.msra.mxu0 0.0
  %790 = vmatprep.subr.mxu0 0.0
  %791 = vmatpush1.msra.mxu0 0.0
  %792 = vmatprep.subr.mxu0 0.0
  %793 = vmatpush1.msra.mxu0 0.0
  %794 = vmatprep.subr.mxu0 0.0
  %795 = vmatpush1.msra.mxu0 0.0
  %796 = vmatprep.subr.mxu0 0.0
  %797 = vmatpush1.msra.mxu0 0.0
  %798 = vmatprep.subr.mxu0 0.0
  %799 = vmatpush1.msra.mxu0 0.0
  %800 = vmatprep.subr.mxu0 0.0
  %801 = vmatpush1.msra.mxu0 0.0
  %802 = vmatprep.subr.mxu0 0.0
  %803 = vmatpush1.msra.mxu0 0.0
  %804 = vmatprep.subr.mxu0 0.0
  %805 = vmatpush1.msra.mxu0 0.0
  %806 = vmatprep.subr.mxu0 0.0
  %807 = vmatpush1.msra.mxu0 0.0
  %808 = vmatprep.subr.mxu0 0.0
  %809 = vmatpush1.msra.mxu0 0.0
  %810 = vmatprep.subr.mxu0 0.0
  %811 = vmatpush1.msra.mxu0 0.0
  %812 = vmatprep.subr.mxu0 0.0
  %813 = vmatpush1.msra.mxu0 0.0
  %814 = vmatprep.mubr.f32.mxu0 0.0
  %815 = vmatmul.mubr.f32.gmra.mrb[0].mxu0 %v734
  %v816 = vpop.f32.mrb[0].mxu0
  %v817 = vadd.f32 0.0, %v816
  %v818 = vpop.f32.mrb[0].mxu0
  %819 = vmatprep.mubr.f32.mxu0 0.0
  %820 = vmatmul.mubr.f32.gmra.mrb[0].mxu0 %v735
  %v821 = vpop.f32.mrb[0].mxu0
  %v822 = vadd.f32 0.0, %v821
  %v823 = vpop.f32.mrb[0].mxu0
  %824 = vmatprep.mubr.f32.mxu0 0.0
  %825 = vmatmul.mubr.f32.gmra.mrb[0].mxu0 %v736
  %v826 = vpop.f32.mrb[0].mxu0
  %v827 = vadd.f32 0.0, %v826
  %v828 = vpop.f32.mrb[0].mxu0
  %829 = vmatprep.mubr.f32.mxu0 0.0
  %830 = vmatmul.mubr.f32.gmra.mrb[0].mxu0 %v737
  %v831 = vpop.f32.mrb[0].mxu0
  %v832 = vadd.f32 0.0, %v831
  %v833 = vpop.f32.mrb[0].mxu0
  %834 = vmatprep.mubr.f32.mxu0 0.0
  %835 = vmatmul.mubr.f32.gmra.mrb[0].mxu0 %v738
  %v836 = vpop.f32.mrb[0].mxu0
  %v837 = vadd.f32 0.0, %v836
  %v838 = vpop.f32.mrb[0].mxu0
  %839 = vmatprep.mubr.f32.mxu0 0.0
  %840 = vmatmul.mubr.f32.gmra.mrb[0].mxu0 %v739
  %v841 = vpop.f32.mrb[0].mxu0
  %v842 = vadd.f32 0.0, %v841
  %v843 = vpop.f32.mrb[0].mxu0
  %844 = vmatprep.mubr.f32.mxu0 0.0
  %845 = vmatmul.mubr.f32.gmra.mrb[0].mxu0 %v740
  %v846 = vpop.f32.mrb[0].mxu0
  %v847 = vadd.f32 0.0, %v846
  %v848 = vpop.f32.mrb[0].mxu0
  %849 = vmatprep.mubr.f32.mxu0 0.0
  %850 = vmatmul.mubr.f32.gmra.mrb[0].mxu0 %v741
  %v851 = vpop.f32.mrb[0].mxu0
  %v852 = vadd.f32 0.0, %v851
  %v853 = vpop.f32.mrb[0].mxu0
  %854 = vmatprep.mubr.f32.mxu0 0.0
  %855 = vmatmul.mubr.f32.gmra.mrb[0].mxu0 %v742
  %v856 = vpop.f32.mrb[0].mxu0
  %v857 = vadd.f32 0.0, %v856
  %v858 = vpop.f32.mrb[0].mxu0
  %859 = vmatprep.mubr.f32.mxu0 0.0
  %860 = vmatmul.mubr.f32.gmra.mrb[0].mxu0 %v743
  %v861 = vpop.f32.mrb[0].mxu0
  %v862 = vadd.f32 0.0, %v861
  %v863 = vpop.f32.mrb[0].mxu0
  %864 = vmatprep.mubr.f32.mxu0 0.0
  %865 = vmatmul.mubr.f32.gmra.mrb[0].mxu0 %v744
  %v866 = vpop.f32.mrb[0].mxu0
  %v867 = vadd.f32 0.0, %v866
  %v868 = vpop.f32.mrb[0].mxu0
  %869 = vmatprep.mubr.f32.mxu0 0.0
  %870 = vmatmul.mubr.f32.gmra.mrb[0].mxu0 %v745
  %v871 = vpop.f32.mrb[0].mxu0
  %v872 = vadd.f32 0.0, %v871
  %v873 = vpop.f32.mrb[0].mxu0
  %874 = vmatprep.mubr.f32.mxu0 0.0
  %875 = vmatmul.mubr.f32.gmra.mrb[0].mxu0 %v746
  %v876 = vpop.f32.mrb[0].mxu0
  %v877 = vadd.f32 0.0, %v876
  %v878 = vpop.f32.mrb[0].mxu0
  %879 = vmatprep.mubr.f32.mxu0 0.0
  %880 = vmatmul.mubr.f32.gmra.mrb[0].mxu0 %v747
  %v881 = vpop.f32.mrb[0].mxu0
  %v882 = vadd.f32 0.0, %v881
  %v883 = vpop.f32.mrb[0].mxu0
  %884 = vmatprep.mubr.f32.mxu0 0.0
  %885 = vmatmul.mubr.f32.gmra.mrb[0].mxu0 %v748
  %v886 = vpop.f32.mrb[0].mxu0
  %v887 = vadd.f32 0.0, %v886
  %v888 = vpop.f32.mrb[0].mxu0
  %889 = vmatprep.mubr.f32.mxu0 0.0
  %890 = vmatmul.mubr.f32.gmra.mrb[0].mxu0 %v749
  %v891 = vpop.f32.mrb[0].mxu0
  %v892 = vadd.f32 0.0, %v891
  %v893 = vpop.f32.mrb[0].mxu0
  %894 = vdwg.mxu0
  %s895 = scalar_lea.vmem %s1, 32
  %v896 = vld [vmem:[%s895] sm:$0xff]
  %v897 = vld [vmem:[%s895 + $0x8] sm:$0xff]
  %v898 = vld [vmem:[%s895 + $0x10] sm:$0xff]
  %v899 = vld [vmem:[%s895 + $0x18] sm:$0xff]
  %v901 = vsel %vm89, %v817, 0
  %v904 = vsel %vm89, %v822, 0
  %v907 = vsel %vm89, %v827, 0
  %v910 = vsel %vm89, %v832, 0
  %v913 = vsel %vm89, %v837, 0
  %v916 = vsel %vm89, %v842, 0
  %v919 = vsel %vm89, %v847, 0
  %v922 = vsel %vm89, %v852, 0
  %v925 = vsel %vm89, %v857, 0
  %v928 = vsel %vm89, %v862, 0
  %v931 = vsel %vm89, %v867, 0
  %v934 = vsel %vm89, %v872, 0
  %v937 = vsel %vm89, %v877, 0
  %v940 = vsel %vm89, %v882, 0
  %v943 = vsel %vm89, %v887, 0
  %v946 = vsel %vm89, %v892, 0
  %948 = vmatprep.subr.mxu0 0.0
  %949 = vmatpush1.msra.mxu0 %v896
  %950 = vmatprep.subr.mxu0 0.0
  %951 = vmatpush1.msra.mxu0 %v897
  %952 = vmatprep.subr.mxu0 0.0
  %953 = vmatpush1.msra.mxu0 %v898
  %954 = vmatprep.subr.mxu0 0.0
  %955 = vmatpush1.msra.mxu0 %v899
  %956 = vmatprep.subr.mxu0 0.0
  %957 = vmatpush1.msra.mxu0 0.0
  %958 = vmatprep.subr.mxu0 0.0
  %959 = vmatpush1.msra.mxu0 0.0
  %960 = vmatprep.subr.mxu0 0.0
  %961 = vmatpush1.msra.mxu0 0.0
  %962 = vmatprep.subr.mxu0 0.0
  %963 = vmatpush1.msra.mxu0 0.0
  %964 = vmatprep.subr.mxu0 0.0
  %965 = vmatpush1.msra.mxu0 0.0
  %966 = vmatprep.subr.mxu0 0.0
  %967 = vmatpush1.msra.mxu0 0.0
  %968 = vmatprep.subr.mxu0 0.0
  %969 = vmatpush1.msra.mxu0 0.0
  %970 = vmatprep.subr.mxu0 0.0
  %971 = vmatpush1.msra.mxu0 0.0
  %972 = vmatprep.subr.mxu0 0.0
  %973 = vmatpush1.msra.mxu0 0.0
  %974 = vmatprep.subr.mxu0 0.0
  %975 = vmatpush1.msra.mxu0 0.0
  %976 = vmatprep.subr.mxu0 0.0
  %977 = vmatpush1.msra.mxu0 0.0
  %978 = vmatprep.subr.mxu0 0.0
  %979 = vmatpush1.msra.mxu0 0.0
  %980 = vmatprep.subr.mxu0 0.0
  %981 = vmatpush1.msra.mxu0 0.0
  %982 = vmatprep.subr.mxu0 0.0
  %983 = vmatpush1.msra.mxu0 0.0
  %984 = vmatprep.subr.mxu0 0.0
  %985 = vmatpush1.msra.mxu0 0.0
  %986 = vmatprep.subr.mxu0 0.0
  %987 = vmatpush1.msra.mxu0 0.0
  %988 = vmatprep.subr.mxu0 0.0
  %989 = vmatpush1.msra.mxu0 0.0
  %990 = vmatprep.subr.mxu0 0.0
  %991 = vmatpush1.msra.mxu0 0.0
  %992 = vmatprep.subr.mxu0 0.0
  %993 = vmatpush1.msra.mxu0 0.0
  %994 = vmatprep.subr.mxu0 0.0
  %995 = vmatpush1.msra.mxu0 0.0
  %996 = vmatprep.subr.mxu0 0.0
  %997 = vmatpush1.msra.mxu0 0.0
  %998 = vmatprep.subr.mxu0 0.0
  %999 = vmatpush1.msra.mxu0 0.0
  %1000 = vmatprep.subr.mxu0 0.0
  %1001 = vmatpush1.msra.mxu0 0.0
  %1002 = vmatprep.subr.mxu0 0.0
  %1003 = vmatpush1.msra.mxu0 0.0
  %1004 = vmatprep.subr.mxu0 0.0
  %1005 = vmatpush1.msra.mxu0 0.0
  %1006 = vmatprep.subr.mxu0 0.0
  %1007 = vmatpush1.msra.mxu0 0.0
  %1008 = vmatprep.subr.mxu0 0.0
  %1009 = vmatpush1.msra.mxu0 0.0
  %1010 = vmatprep.subr.mxu0 0.0
  %1011 = vmatpush1.msra.mxu0 0.0
  %1012 = vmatprep.mubr.f32.mxu0 0.0
  %1013 = vmatmul.mubr.f32.gmra.mrb[0].mxu0 %v901
  %v1014 = vpop.f32.mrb[0].mxu0
  %v1015 = vadd.f32 0.0, %v1014
  %v1016 = vpop.f32.mrb[0].mxu0
  %1017 = vmatprep.mubr.f32.mxu0 0.0
  %1018 = vmatmul.mubr.f32.gmra.mrb[0].mxu0 %v904
  %v1019 = vpop.f32.mrb[0].mxu0
  %v1020 = vadd.f32 0.0, %v1019
  %v1021 = vpop.f32.mrb[0].mxu0
  %1022 = vmatprep.mubr.f32.mxu0 0.0
  %1023 = vmatmul.mubr.f32.gmra.mrb[0].mxu0 %v907
  %v1024 = vpop.f32.mrb[0].mxu0
  %v1025 = vadd.f32 0.0, %v1024
  %v1026 = vpop.f32.mrb[0].mxu0
  %1027 = vmatprep.mubr.f32.mxu0 0.0
  %1028 = vmatmul.mubr.f32.gmra.mrb[0].mxu0 %v910
  %v1029 = vpop.f32.mrb[0].mxu0
  %v1030 = vadd.f32 0.0, %v1029
  %v1031 = vpop.f32.mrb[0].mxu0
  %1032 = vmatprep.mubr.f32.mxu0 0.0
  %1033 = vmatmul.mubr.f32.gmra.mrb[0].mxu0 %v913
  %v1034 = vpop.f32.mrb[0].mxu0
  %v1035 = vadd.f32 0.0, %v1034
  %v1036 = vpop.f32.mrb[0].mxu0
  %1037 = vmatprep.mubr.f32.mxu0 0.0
  %1038 = vmatmul.mubr.f32.gmra.mrb[0].mxu0 %v916
  %v1039 = vpop.f32.mrb[0].mxu0
  %v1040 = vadd.f32 0.0, %v1039
  %v1041 = vpop.f32.mrb[0].mxu0
  %1042 = vmatprep.mubr.f32.mxu0 0.0
  %1043 = vmatmul.mubr.f32.gmra.mrb[0].mxu0 %v919
  %v1044 = vpop.f32.mrb[0].mxu0
  %v1045 = vadd.f32 0.0, %v1044
  %v1046 = vpop.f32.mrb[0].mxu0
  %1047 = vmatprep.mubr.f32.mxu0 0.0
  %1048 = vmatmul.mubr.f32.gmra.mrb[0].mxu0 %v922
  %v1049 = vpop.f32.mrb[0].mxu0
  %v1050 = vadd.f32 0.0, %v1049
  %v1051 = vpop.f32.mrb[0].mxu0
  %1052 = vmatprep.mubr.f32.mxu0 0.0
  %1053 = vmatmul.mubr.f32.gmra.mrb[0].mxu0 %v925
  %v1054 = vpop.f32.mrb[0].mxu0
  %v1055 = vadd.f32 0.0, %v1054
  %v1056 = vpop.f32.mrb[0].mxu0
  %1057 = vmatprep.mubr.f32.mxu0 0.0
  %1058 = vmatmul.mubr.f32.gmra.mrb[0].mxu0 %v928
  %v1059 = vpop.f32.mrb[0].mxu0
  %v1060 = vadd.f32 0.0, %v1059
  %v1061 = vpop.f32.mrb[0].mxu0
  %1062 = vmatprep.mubr.f32.mxu0 0.0
  %1063 = vmatmul.mubr.f32.gmra.mrb[0].mxu0 %v931
  %v1064 = vpop.f32.mrb[0].mxu0
  %v1065 = vadd.f32 0.0, %v1064
  %v1066 = vpop.f32.mrb[0].mxu0
  %1067 = vmatprep.mubr.f32.mxu0 0.0
  %1068 = vmatmul.mubr.f32.gmra.mrb[0].mxu0 %v934
  %v1069 = vpop.f32.mrb[0].mxu0
  %v1070 = vadd.f32 0.0, %v1069
  %v1071 = vpop.f32.mrb[0].mxu0
  %1072 = vmatprep.mubr.f32.mxu0 0.0
  %1073 = vmatmul.mubr.f32.gmra.mrb[0].mxu0 %v937
  %v1074 = vpop.f32.mrb[0].mxu0
  %v1075 = vadd.f32 0.0, %v1074
  %v1076 = vpop.f32.mrb[0].mxu0
  %1077 = vmatprep.mubr.f32.mxu0 0.0
  %1078 = vmatmul.mubr.f32.gmra.mrb[0].mxu0 %v940
  %v1079 = vpop.f32.mrb[0].mxu0
  %v1080 = vadd.f32 0.0, %v1079
  %v1081 = vpop.f32.mrb[0].mxu0
  %1082 = vmatprep.mubr.f32.mxu0 0.0
  %1083 = vmatmul.mubr.f32.gmra.mrb[0].mxu0 %v943
  %v1084 = vpop.f32.mrb[0].mxu0
  %v1085 = vadd.f32 0.0, %v1084
  %v1086 = vpop.f32.mrb[0].mxu0
  %1087 = vmatprep.mubr.f32.mxu0 0.0
  %1088 = vmatmul.mubr.f32.gmra.mrb[0].mxu0 %v946
  %v1089 = vpop.f32.mrb[0].mxu0
  %v1090 = vadd.f32 0.0, %v1089
  %v1091 = vpop.f32.mrb[0].mxu0
  %1092 = vdwg.mxu0
  %s1093 = scalar_lea.vmem %s2, 2
  %v1094 = vld [vmem:[%s1093] sm:$0x3]
  %v1095 = vlaneseq
  %v1096 = vshrl.u32 %v1095, 7
  %v1097 = vsub.s32 0, %v1096
  %v1098 = vrot.slane %v1094, %v1097
  %v1099 = vmul.f32 %v1015, %v1098
  %v1100 = vmul.f32 %v1020, %v1098
  %v1101 = vmul.f32 %v1025, %v1098
  %v1102 = vmul.f32 %v1030, %v1098
  %v1103 = vmul.f32 %v1035, %v1098
  %v1104 = vmul.f32 %v1040, %v1098
  %v1105 = vmul.f32 %v1045, %v1098
  %v1106 = vmul.f32 %v1050, %v1098
  %v1107 = vmul.f32 %v1055, %v1098
  %v1108 = vmul.f32 %v1060, %v1098
  %v1109 = vmul.f32 %v1065, %v1098
  %v1110 = vmul.f32 %v1070, %v1098
  %v1111 = vmul.f32 %v1075, %v1098
  %v1112 = vmul.f32 %v1080, %v1098
  %v1113 = vmul.f32 %v1085, %v1098
  %v1114 = vmul.f32 %v1090, %v1098
  %v1115 = vsel %vm89, %v1099, 0.0
  %1116 = vadd.xlane.f32.xlu0 %v1115
  %v1117 = vpop.xlane.xlu0 %1116
  %v1118 = vsel %vm89, %v1100, 0.0
  %1119 = vadd.xlane.f32.xlu0 %v1118
  %v1120 = vpop.xlane.xlu0 %1119
  %v1121 = vsel %vm89, %v1101, 0.0
  %1122 = vadd.xlane.f32.xlu0 %v1121
  %v1123 = vpop.xlane.xlu0 %1122
  %v1124 = vsel %vm89, %v1102, 0.0
  %1125 = vadd.xlane.f32.xlu0 %v1124
  %v1126 = vpop.xlane.xlu0 %1125
  %v1127 = vsel %vm89, %v1103, 0.0
  %1128 = vadd.xlane.f32.xlu0 %v1127
  %v1129 = vpop.xlane.xlu0 %1128
  %v1130 = vsel %vm89, %v1104, 0.0
  %1131 = vadd.xlane.f32.xlu0 %v1130
  %v1132 = vpop.xlane.xlu0 %1131
  %v1133 = vsel %vm89, %v1105, 0.0
  %1134 = vadd.xlane.f32.xlu0 %v1133
  %v1135 = vpop.xlane.xlu0 %1134
  %v1136 = vsel %vm89, %v1106, 0.0
  %1137 = vadd.xlane.f32.xlu0 %v1136
  %v1138 = vpop.xlane.xlu0 %1137
  %v1139 = vsel %vm89, %v1107, 0.0
  %1140 = vadd.xlane.f32.xlu0 %v1139
  %v1141 = vpop.xlane.xlu0 %1140
  %v1142 = vsel %vm89, %v1108, 0.0
  %1143 = vadd.xlane.f32.xlu0 %v1142
  %v1144 = vpop.xlane.xlu0 %1143
  %v1145 = vsel %vm89, %v1109, 0.0
  %1146 = vadd.xlane.f32.xlu0 %v1145
  %v1147 = vpop.xlane.xlu0 %1146
  %v1148 = vsel %vm89, %v1110, 0.0
  %1149 = vadd.xlane.f32.xlu0 %v1148
  %v1150 = vpop.xlane.xlu0 %1149
  %v1151 = vsel %vm89, %v1111, 0.0
  %1152 = vadd.xlane.f32.xlu0 %v1151
  %v1153 = vpop.xlane.xlu0 %1152
  %v1154 = vsel %vm89, %v1112, 0.0
  %1155 = vadd.xlane.f32.xlu0 %v1154
  %v1156 = vpop.xlane.xlu0 %1155
  %v1157 = vsel %vm89, %v1113, 0.0
  %1158 = vadd.xlane.f32.xlu0 %v1157
  %v1159 = vpop.xlane.xlu0 %1158
  %v1160 = vsel %vm89, %v1114, 0.0
  %1161 = vadd.xlane.f32.xlu0 %v1160
  %v1162 = vpop.xlane.xlu0 %1161
  %v1164 = vrot.slane %v1094, 1
  %v1165 = vsel %vm89, %v1164, 0
  %v1168 = vsel %vm89, %v1015, 0
  %v1171 = vsel %vm89, %v1020, 0
  %v1174 = vsel %vm89, %v1025, 0
  %v1177 = vsel %vm89, %v1030, 0
  %v1180 = vsel %vm89, %v1035, 0
  %v1183 = vsel %vm89, %v1040, 0
  %v1186 = vsel %vm89, %v1045, 0
  %v1189 = vsel %vm89, %v1050, 0
  %v1192 = vsel %vm89, %v1055, 0
  %v1195 = vsel %vm89, %v1060, 0
  %v1198 = vsel %vm89, %v1065, 0
  %v1201 = vsel %vm89, %v1070, 0
  %v1204 = vsel %vm89, %v1075, 0
  %v1207 = vsel %vm89, %v1080, 0
  %v1210 = vsel %vm89, %v1085, 0
  %v1213 = vsel %vm89, %v1090, 0
  %1215 = vmatprep.subr.mxu0 0.0
  %1216 = vmatpush1.xpose.msra.mxu0 %v1168
  %1217 = vmatprep.subr.mxu0 0.0
  %1218 = vmatpush1.xpose.msra.mxu0 %v1171
  %1219 = vmatprep.subr.mxu0 0.0
  %1220 = vmatpush1.xpose.msra.mxu0 %v1174
  %1221 = vmatprep.subr.mxu0 0.0
  %1222 = vmatpush1.xpose.msra.mxu0 %v1177
  %1223 = vmatprep.subr.mxu0 0.0
  %1224 = vmatpush1.xpose.msra.mxu0 %v1180
  %1225 = vmatprep.subr.mxu0 0.0
  %1226 = vmatpush1.xpose.msra.mxu0 %v1183
  %1227 = vmatprep.subr.mxu0 0.0
  %1228 = vmatpush1.xpose.msra.mxu0 %v1186
  %1229 = vmatprep.subr.mxu0 0.0
  %1230 = vmatpush1.xpose.msra.mxu0 %v1189
  %1231 = vmatprep.subr.mxu0 0.0
  %1232 = vmatpush1.xpose.msra.mxu0 %v1192
  %1233 = vmatprep.subr.mxu0 0.0
  %1234 = vmatpush1.xpose.msra.mxu0 %v1195
  %1235 = vmatprep.subr.mxu0 0.0
  %1236 = vmatpush1.xpose.msra.mxu0 %v1198
  %1237 = vmatprep.subr.mxu0 0.0
  %1238 = vmatpush1.xpose.msra.mxu0 %v1201
  %1239 = vmatprep.subr.mxu0 0.0
  %1240 = vmatpush1.xpose.msra.mxu0 %v1204
  %1241 = vmatprep.subr.mxu0 0.0
  %1242 = vmatpush1.xpose.msra.mxu0 %v1207
  %1243 = vmatprep.subr.mxu0 0.0
  %1244 = vmatpush1.xpose.msra.mxu0 %v1210
  %1245 = vmatprep.subr.mxu0 0.0
  %1246 = vmatpush1.xpose.msra.mxu0 %v1213
  %1247 = vmatprep.subr.mxu0 0.0
  %1248 = vmatpush1.xpose.msra.mxu0 0.0
  %1249 = vmatprep.subr.mxu0 0.0
  %1250 = vmatpush1.xpose.msra.mxu0 0.0
  %1251 = vmatprep.subr.mxu0 0.0
  %1252 = vmatpush1.xpose.msra.mxu0 0.0
  %1253 = vmatprep.subr.mxu0 0.0
  %1254 = vmatpush1.xpose.msra.mxu0 0.0
  %1255 = vmatprep.subr.mxu0 0.0
  %1256 = vmatpush1.xpose.msra.mxu0 0.0
  %1257 = vmatprep.subr.mxu0 0.0
  %1258 = vmatpush1.xpose.msra.mxu0 0.0
  %1259 = vmatprep.subr.mxu0 0.0
  %1260 = vmatpush1.xpose.msra.mxu0 0.0
  %1261 = vmatprep.subr.mxu0 0.0
  %1262 = vmatpush1.xpose.msra.mxu0 0.0
  %1263 = vmatprep.subr.mxu0 0.0
  %1264 = vmatpush1.xpose.msra.mxu0 0.0
  %1265 = vmatprep.subr.mxu0 0.0
  %1266 = vmatpush1.xpose.msra.mxu0 0.0
  %1267 = vmatprep.subr.mxu0 0.0
  %1268 = vmatpush1.xpose.msra.mxu0 0.0
  %1269 = vmatprep.subr.mxu0 0.0
  %1270 = vmatpush1.xpose.msra.mxu0 0.0
  %1271 = vmatprep.subr.mxu0 0.0
  %1272 = vmatpush1.xpose.msra.mxu0 0.0
  %1273 = vmatprep.subr.mxu0 0.0
  %1274 = vmatpush1.xpose.msra.mxu0 0.0
  %1275 = vmatprep.subr.mxu0 0.0
  %1276 = vmatpush1.xpose.msra.mxu0 0.0
  %1277 = vmatprep.subr.mxu0 0.0
  %1278 = vmatpush1.xpose.msra.mxu0 0.0
  %1279 = vmatprep.mubr.f32.mxu0 0.0
  %1280 = vmatmul.mubr.f32.gmra.mrb[0].mxu0 %v1165
  %v1281 = vpop.f32.mrb[0].mxu0
  %v1282 = vadd.f32 0.0, %v1281
  %v1283 = vpop.f32.mrb[0].mxu0
  %1284 = vdwg.mxu0
  %v1285 = vlaneseq
  %v1286 = vshrl.u32 %v1285, 7
  %v1287 = vsub.s32 0, %v1286
  %v1288 = vrot.slane %v1282, %v1287
  %v1289 = vadd.f32 %v1117, %v1288
  %v1290 = vadd.f32 %v1120, %v1288
  %v1291 = vadd.f32 %v1123, %v1288
  %v1292 = vadd.f32 %v1126, %v1288
  %v1293 = vadd.f32 %v1129, %v1288
  %v1294 = vadd.f32 %v1132, %v1288
  %v1295 = vadd.f32 %v1135, %v1288
  %v1296 = vadd.f32 %v1138, %v1288
  %v1297 = vadd.f32 %v1141, %v1288
  %v1298 = vadd.f32 %v1144, %v1288
  %v1299 = vadd.f32 %v1147, %v1288
  %v1300 = vadd.f32 %v1150, %v1288
  %v1301 = vadd.f32 %v1153, %v1288
  %v1302 = vadd.f32 %v1156, %v1288
  %v1303 = vadd.f32 %v1159, %v1288
  %v1304 = vadd.f32 %v1162, %v1288
  %vm1305 = vcmp.gt.f32.partialorder %v1289, 0.0
  %vm1306 = vcmp.gt.f32.partialorder %v1290, 0.0
  %vm1307 = vcmp.gt.f32.partialorder %v1291, 0.0
  %vm1308 = vcmp.gt.f32.partialorder %v1292, 0.0
  %vm1309 = vcmp.gt.f32.partialorder %v1293, 0.0
  %vm1310 = vcmp.gt.f32.partialorder %v1294, 0.0
  %vm1311 = vcmp.gt.f32.partialorder %v1295, 0.0
  %vm1312 = vcmp.gt.f32.partialorder %v1296, 0.0
  %vm1313 = vcmp.gt.f32.partialorder %v1297, 0.0
  %vm1314 = vcmp.gt.f32.partialorder %v1298, 0.0
  %vm1315 = vcmp.gt.f32.partialorder %v1299, 0.0
  %vm1316 = vcmp.gt.f32.partialorder %v1300, 0.0
  %vm1317 = vcmp.gt.f32.partialorder %v1301, 0.0
  %vm1318 = vcmp.gt.f32.partialorder %v1302, 0.0
  %vm1319 = vcmp.gt.f32.partialorder %v1303, 0.0
  %vm1320 = vcmp.gt.f32.partialorder %v1304, 0.0
  %v1321 = vmul.f32 %v1289, 0.2
  %v1322 = vmul.f32 %v1290, 0.2
  %v1323 = vmul.f32 %v1291, 0.2
  %v1324 = vmul.f32 %v1292, 0.2
  %v1325 = vmul.f32 %v1293, 0.2
  %v1326 = vmul.f32 %v1294, 0.2
  %v1327 = vmul.f32 %v1295, 0.2
  %v1328 = vmul.f32 %v1296, 0.2
  %v1329 = vmul.f32 %v1297, 0.2
  %v1330 = vmul.f32 %v1298, 0.2
  %v1331 = vmul.f32 %v1299, 0.2
  %v1332 = vmul.f32 %v1300, 0.2
  %v1333 = vmul.f32 %v1301, 0.2
  %v1334 = vmul.f32 %v1302, 0.2
  %v1335 = vmul.f32 %v1303, 0.2
  %v1336 = vmul.f32 %v1304, 0.2
  %v1337 = vsel %vm1305, %v1289, %v1321
  %v1338 = vsel %vm1306, %v1290, %v1322
  %v1339 = vsel %vm1307, %v1291, %v1323
  %v1340 = vsel %vm1308, %v1292, %v1324
  %v1341 = vsel %vm1309, %v1293, %v1325
  %v1342 = vsel %vm1310, %v1294, %v1326
  %v1343 = vsel %vm1311, %v1295, %v1327
  %v1344 = vsel %vm1312, %v1296, %v1328
  %v1345 = vsel %vm1313, %v1297, %v1329
  %v1346 = vsel %vm1314, %v1298, %v1330
  %v1347 = vsel %vm1315, %v1299, %v1331
  %v1348 = vsel %vm1316, %v1300, %v1332
  %v1349 = vsel %vm1317, %v1301, %v1333
  %v1350 = vsel %vm1318, %v1302, %v1334
  %v1351 = vsel %vm1319, %v1303, %v1335
  %v1352 = vsel %vm1320, %v1304, %v1336
  %v1353 = vsel %vm53, %v1337, 0.0
  %v1354 = vsel %vm54, %v1338, 0.0
  %v1355 = vsel %vm55, %v1339, 0.0
  %v1356 = vsel %vm56, %v1340, 0.0
  %v1357 = vsel %vm57, %v1341, 0.0
  %v1358 = vsel %vm58, %v1342, 0.0
  %v1359 = vsel %vm59, %v1343, 0.0
  %v1360 = vsel %vm60, %v1344, 0.0
  %v1361 = vsel %vm61, %v1345, 0.0
  %v1362 = vsel %vm62, %v1346, 0.0
  %v1363 = vsel %vm63, %v1347, 0.0
  %v1364 = vsel %vm64, %v1348, 0.0
  %v1365 = vsel %vm65, %v1349, 0.0
  %v1366 = vsel %vm66, %v1350, 0.0
  %v1367 = vsel %vm67, %v1351, 0.0
  %v1368 = vsel %vm68, %v1352, 0.0
  %1369 = vmax.xlane.f32.xlu0 %v1353
  %v1370 = vpop.xlane.xlu0 %1369
  %1371 = vmax.xlane.f32.xlu0 %v1354
  %v1372 = vpop.xlane.xlu0 %1371
  %1373 = vmax.xlane.f32.xlu0 %v1355
  %v1374 = vpop.xlane.xlu0 %1373
  %1375 = vmax.xlane.f32.xlu0 %v1356
  %v1376 = vpop.xlane.xlu0 %1375
  %1377 = vmax.xlane.f32.xlu0 %v1357
  %v1378 = vpop.xlane.xlu0 %1377
  %1379 = vmax.xlane.f32.xlu0 %v1358
  %v1380 = vpop.xlane.xlu0 %1379
  %1381 = vmax.xlane.f32.xlu0 %v1359
  %v1382 = vpop.xlane.xlu0 %1381
  %1383 = vmax.xlane.f32.xlu0 %v1360
  %v1384 = vpop.xlane.xlu0 %1383
  %1385 = vmax.xlane.f32.xlu0 %v1361
  %v1386 = vpop.xlane.xlu0 %1385
  %1387 = vmax.xlane.f32.xlu0 %v1362
  %v1388 = vpop.xlane.xlu0 %1387
  %1389 = vmax.xlane.f32.xlu0 %v1363
  %v1390 = vpop.xlane.xlu0 %1389
  %1391 = vmax.xlane.f32.xlu0 %v1364
  %v1392 = vpop.xlane.xlu0 %1391
  %1393 = vmax.xlane.f32.xlu0 %v1365
  %v1394 = vpop.xlane.xlu0 %1393
  %1395 = vmax.xlane.f32.xlu0 %v1366
  %v1396 = vpop.xlane.xlu0 %1395
  %1397 = vmax.xlane.f32.xlu0 %v1367
  %v1398 = vpop.xlane.xlu0 %1397
  %1399 = vmax.xlane.f32.xlu0 %v1368
  %v1400 = vpop.xlane.xlu0 %1399
  %v1401 = vsub.f32 %v1353, %v1370
  %v1402 = vsub.f32 %v1354, %v1372
  %v1403 = vsub.f32 %v1355, %v1374
  %v1404 = vsub.f32 %v1356, %v1376
  %v1405 = vsub.f32 %v1357, %v1378
  %v1406 = vsub.f32 %v1358, %v1380
  %v1407 = vsub.f32 %v1359, %v1382
  %v1408 = vsub.f32 %v1360, %v1384
  %v1409 = vsub.f32 %v1361, %v1386
  %v1410 = vsub.f32 %v1362, %v1388
  %v1411 = vsub.f32 %v1363, %v1390
  %v1412 = vsub.f32 %v1364, %v1392
  %v1413 = vsub.f32 %v1365, %v1394
  %v1414 = vsub.f32 %v1366, %v1396
  %v1415 = vsub.f32 %v1367, %v1398
  %v1416 = vsub.f32 %v1368, %v1400
  %v1417 = vmul.f32 %v1401, 1.442695
  %v1418 = vpow.pop %v1417
  %v1419 = vmul.f32 %v1402, 1.442695
  %v1420 = vpow.pop %v1419
  %v1421 = vmul.f32 %v1403, 1.442695
  %v1422 = vpow.pop %v1421
  %v1423 = vmul.f32 %v1404, 1.442695
  %v1424 = vpow.pop %v1423
  %v1425 = vmul.f32 %v1405, 1.442695
  %v1426 = vpow.pop %v1425
  %v1427 = vmul.f32 %v1406, 1.442695
  %v1428 = vpow.pop %v1427
  %v1429 = vmul.f32 %v1407, 1.442695
  %v1430 = vpow.pop %v1429
  %v1431 = vmul.f32 %v1408, 1.442695
  %v1432 = vpow.pop %v1431
  %v1433 = vmul.f32 %v1409, 1.442695
  %v1434 = vpow.pop %v1433
  %v1435 = vmul.f32 %v1410, 1.442695
  %v1436 = vpow.pop %v1435
  %v1437 = vmul.f32 %v1411, 1.442695
  %v1438 = vpow.pop %v1437
  %v1439 = vmul.f32 %v1412, 1.442695
  %v1440 = vpow.pop %v1439
  %v1441 = vmul.f32 %v1413, 1.442695
  %v1442 = vpow.pop %v1441
  %v1443 = vmul.f32 %v1414, 1.442695
  %v1444 = vpow.pop %v1443
  %v1445 = vmul.f32 %v1415, 1.442695
  %v1446 = vpow.pop %v1445
  %v1447 = vmul.f32 %v1416, 1.442695
  %v1448 = vpow.pop %v1447
  %1449 = vadd.xlane.f32.xlu0 %v1418
  %v1450 = vpop.xlane.xlu0 %1449
  %1451 = vadd.xlane.f32.xlu0 %v1420
  %v1452 = vpop.xlane.xlu0 %1451
  %1453 = vadd.xlane.f32.xlu0 %v1422
  %v1454 = vpop.xlane.xlu0 %1453
  %1455 = vadd.xlane.f32.xlu0 %v1424
  %v1456 = vpop.xlane.xlu0 %1455
  %1457 = vadd.xlane.f32.xlu0 %v1426
  %v1458 = vpop.xlane.xlu0 %1457
  %1459 = vadd.xlane.f32.xlu0 %v1428
  %v1460 = vpop.xlane.xlu0 %1459
  %1461 = vadd.xlane.f32.xlu0 %v1430
  %v1462 = vpop.xlane.xlu0 %1461
  %1463 = vadd.xlane.f32.xlu0 %v1432
  %v1464 = vpop.xlane.xlu0 %1463
  %1465 = vadd.xlane.f32.xlu0 %v1434
  %v1466 = vpop.xlane.xlu0 %1465
  %1467 = vadd.xlane.f32.xlu0 %v1436
  %v1468 = vpop.xlane.xlu0 %1467
  %1469 = vadd.xlane.f32.xlu0 %v1438
  %v1470 = vpop.xlane.xlu0 %1469
  %1471 = vadd.xlane.f32.xlu0 %v1440
  %v1472 = vpop.xlane.xlu0 %1471
  %1473 = vadd.xlane.f32.xlu0 %v1442
  %v1474 = vpop.xlane.xlu0 %1473
  %1475 = vadd.xlane.f32.xlu0 %v1444
  %v1476 = vpop.xlane.xlu0 %1475
  %1477 = vadd.xlane.f32.xlu0 %v1446
  %v1478 = vpop.xlane.xlu0 %1477
  %1479 = vadd.xlane.f32.xlu0 %v1448
  %v1480 = vpop.xlane.xlu0 %1479
  %v1481 = vrcp.pop %v1450
  %v1482 = vrcp.pop %v1452
  %v1483 = vrcp.pop %v1454
  %v1484 = vrcp.pop %v1456
  %v1485 = vrcp.pop %v1458
  %v1486 = vrcp.pop %v1460
  %v1487 = vrcp.pop %v1462
  %v1488 = vrcp.pop %v1464
  %v1489 = vrcp.pop %v1466
  %v1490 = vrcp.pop %v1468
  %v1491 = vrcp.pop %v1470
  %v1492 = vrcp.pop %v1472
  %v1493 = vrcp.pop %v1474
  %v1494 = vrcp.pop %v1476
  %v1495 = vrcp.pop %v1478
  %v1496 = vrcp.pop %v1480
  %v1497 = vmul.f32 %v1450, %v1481
  %v1498 = vmul.f32 %v1452, %v1482
  %v1499 = vmul.f32 %v1454, %v1483
  %v1500 = vmul.f32 %v1456, %v1484
  %v1501 = vmul.f32 %v1458, %v1485
  %v1502 = vmul.f32 %v1460, %v1486
  %v1503 = vmul.f32 %v1462, %v1487
  %v1504 = vmul.f32 %v1464, %v1488
  %v1505 = vmul.f32 %v1466, %v1489
  %v1506 = vmul.f32 %v1468, %v1490
  %v1507 = vmul.f32 %v1470, %v1491
  %v1508 = vmul.f32 %v1472, %v1492
  %v1509 = vmul.f32 %v1474, %v1493
  %v1510 = vmul.f32 %v1476, %v1494
  %v1511 = vmul.f32 %v1478, %v1495
  %v1512 = vmul.f32 %v1480, %v1496
  %v1513 = vsub.f32 2.0, %v1497
  %v1514 = vsub.f32 2.0, %v1498
  %v1515 = vsub.f32 2.0, %v1499
  %v1516 = vsub.f32 2.0, %v1500
  %v1517 = vsub.f32 2.0, %v1501
  %v1518 = vsub.f32 2.0, %v1502
  %v1519 = vsub.f32 2.0, %v1503
  %v1520 = vsub.f32 2.0, %v1504
  %v1521 = vsub.f32 2.0, %v1505
  %v1522 = vsub.f32 2.0, %v1506
  %v1523 = vsub.f32 2.0, %v1507
  %v1524 = vsub.f32 2.0, %v1508
  %v1525 = vsub.f32 2.0, %v1509
  %v1526 = vsub.f32 2.0, %v1510
  %v1527 = vsub.f32 2.0, %v1511
  %v1528 = vsub.f32 2.0, %v1512
  %v1529 = vmul.f32 %v1481, %v1513
  %v1530 = vmul.f32 %v1482, %v1514
  %v1531 = vmul.f32 %v1483, %v1515
  %v1532 = vmul.f32 %v1484, %v1516
  %v1533 = vmul.f32 %v1485, %v1517
  %v1534 = vmul.f32 %v1486, %v1518
  %v1535 = vmul.f32 %v1487, %v1519
  %v1536 = vmul.f32 %v1488, %v1520
  %v1537 = vmul.f32 %v1489, %v1521
  %v1538 = vmul.f32 %v1490, %v1522
  %v1539 = vmul.f32 %v1491, %v1523
  %v1540 = vmul.f32 %v1492, %v1524
  %v1541 = vmul.f32 %v1493, %v1525
  %v1542 = vmul.f32 %v1494, %v1526
  %v1543 = vmul.f32 %v1495, %v1527
  %v1544 = vmul.f32 %v1496, %v1528
  %v1545 = vmul.f32 %v1418, %v1529
  %v1546 = vmul.f32 %v1420, %v1530
  %v1547 = vmul.f32 %v1422, %v1531
  %v1548 = vmul.f32 %v1424, %v1532
  %v1549 = vmul.f32 %v1426, %v1533
  %v1550 = vmul.f32 %v1428, %v1534
  %v1551 = vmul.f32 %v1430, %v1535
  %v1552 = vmul.f32 %v1432, %v1536
  %v1553 = vmul.f32 %v1434, %v1537
  %v1554 = vmul.f32 %v1436, %v1538
  %v1555 = vmul.f32 %v1438, %v1539
  %v1556 = vmul.f32 %v1440, %v1540
  %v1557 = vmul.f32 %v1442, %v1541
  %v1558 = vmul.f32 %v1444, %v1542
  %v1559 = vmul.f32 %v1446, %v1543
  %v1560 = vmul.f32 %v1448, %v1544
  %1561 = vmatprep.subr.mxu0 0.0
  %1562 = vmatpush1.msra.mxu0 %v1015
  %1563 = vmatprep.subr.mxu0 0.0
  %1564 = vmatpush1.msra.mxu0 %v1020
  %1565 = vmatprep.subr.mxu0 0.0
  %1566 = vmatpush1.msra.mxu0 %v1025
  %1567 = vmatprep.subr.mxu0 0.0
  %1568 = vmatpush1.msra.mxu0 %v1030
  %1569 = vmatprep.subr.mxu0 0.0
  %1570 = vmatpush1.msra.mxu0 %v1035
  %1571 = vmatprep.subr.mxu0 0.0
  %1572 = vmatpush1.msra.mxu0 %v1040
  %1573 = vmatprep.subr.mxu0 0.0
  %1574 = vmatpush1.msra.mxu0 %v1045
  %1575 = vmatprep.subr.mxu0 0.0
  %1576 = vmatpush1.msra.mxu0 %v1050
  %1577 = vmatprep.subr.mxu0 0.0
  %1578 = vmatpush1.msra.mxu0 %v1055
  %1579 = vmatprep.subr.mxu0 0.0
  %1580 = vmatpush1.msra.mxu0 %v1060
  %1581 = vmatprep.subr.mxu0 0.0
  %1582 = vmatpush1.msra.mxu0 %v1065
  %1583 = vmatprep.subr.mxu0 0.0
  %1584 = vmatpush1.msra.mxu0 %v1070
  %1585 = vmatprep.subr.mxu0 0.0
  %1586 = vmatpush1.msra.mxu0 %v1075
  %1587 = vmatprep.subr.mxu0 0.0
  %1588 = vmatpush1.msra.mxu0 %v1080
  %1589 = vmatprep.subr.mxu0 0.0
  %1590 = vmatpush1.msra.mxu0 %v1085
  %1591 = vmatprep.subr.mxu0 0.0
  %1592 = vmatpush1.msra.mxu0 %v1090
  %1593 = vmatprep.subr.mxu0 0.0
  %1594 = vmatpush1.msra.mxu0 0.0
  %1595 = vmatprep.subr.mxu0 0.0
  %1596 = vmatpush1.msra.mxu0 0.0
  %1597 = vmatprep.subr.mxu0 0.0
  %1598 = vmatpush1.msra.mxu0 0.0
  %1599 = vmatprep.subr.mxu0 0.0
  %1600 = vmatpush1.msra.mxu0 0.0
  %1601 = vmatprep.subr.mxu0 0.0
  %1602 = vmatpush1.msra.mxu0 0.0
  %1603 = vmatprep.subr.mxu0 0.0
  %1604 = vmatpush1.msra.mxu0 0.0
  %1605 = vmatprep.subr.mxu0 0.0
  %1606 = vmatpush1.msra.mxu0 0.0
  %1607 = vmatprep.subr.mxu0 0.0
  %1608 = vmatpush1.msra.mxu0 0.0
  %1609 = vmatprep.subr.mxu0 0.0
  %1610 = vmatpush1.msra.mxu0 0.0
  %1611 = vmatprep.subr.mxu0 0.0
  %1612 = vmatpush1.msra.mxu0 0.0
  %1613 = vmatprep.subr.mxu0 0.0
  %1614 = vmatpush1.msra.mxu0 0.0
  %1615 = vmatprep.subr.mxu0 0.0
  %1616 = vmatpush1.msra.mxu0 0.0
  %1617 = vmatprep.subr.mxu0 0.0
  %1618 = vmatpush1.msra.mxu0 0.0
  %1619 = vmatprep.subr.mxu0 0.0
  %1620 = vmatpush1.msra.mxu0 0.0
  %1621 = vmatprep.subr.mxu0 0.0
  %1622 = vmatpush1.msra.mxu0 0.0
  %1623 = vmatprep.subr.mxu0 0.0
  %1624 = vmatpush1.msra.mxu0 0.0
  %1625 = vmatprep.mubr.f32.mxu0 0.0
  %1626 = vmatmul.mubr.f32.gmra.mrb[0].mxu0 %v1545
  %v1627 = vpop.f32.mrb[0].mxu0
  %v1628 = vadd.f32 0.0, %v1627
  %v1629 = vpop.f32.mrb[0].mxu0
  %1630 = vmatprep.mubr.f32.mxu0 0.0
  %1631 = vmatmul.mubr.f32.gmra.mrb[0].mxu0 %v1546
  %v1632 = vpop.f32.mrb[0].mxu0
  %v1633 = vadd.f32 0.0, %v1632
  %v1634 = vpop.f32.mrb[0].mxu0
  %1635 = vmatprep.mubr.f32.mxu0 0.0
  %1636 = vmatmul.mubr.f32.gmra.mrb[0].mxu0 %v1547
  %v1637 = vpop.f32.mrb[0].mxu0
  %v1638 = vadd.f32 0.0, %v1637
  %v1639 = vpop.f32.mrb[0].mxu0
  %1640 = vmatprep.mubr.f32.mxu0 0.0
  %1641 = vmatmul.mubr.f32.gmra.mrb[0].mxu0 %v1548
  %v1642 = vpop.f32.mrb[0].mxu0
  %v1643 = vadd.f32 0.0, %v1642
  %v1644 = vpop.f32.mrb[0].mxu0
  %1645 = vmatprep.mubr.f32.mxu0 0.0
  %1646 = vmatmul.mubr.f32.gmra.mrb[0].mxu0 %v1549
  %v1647 = vpop.f32.mrb[0].mxu0
  %v1648 = vadd.f32 0.0, %v1647
  %v1649 = vpop.f32.mrb[0].mxu0
  %1650 = vmatprep.mubr.f32.mxu0 0.0
  %1651 = vmatmul.mubr.f32.gmra.mrb[0].mxu0 %v1550
  %v1652 = vpop.f32.mrb[0].mxu0
  %v1653 = vadd.f32 0.0, %v1652
  %v1654 = vpop.f32.mrb[0].mxu0
  %1655 = vmatprep.mubr.f32.mxu0 0.0
  %1656 = vmatmul.mubr.f32.gmra.mrb[0].mxu0 %v1551
  %v1657 = vpop.f32.mrb[0].mxu0
  %v1658 = vadd.f32 0.0, %v1657
  %v1659 = vpop.f32.mrb[0].mxu0
  %1660 = vmatprep.mubr.f32.mxu0 0.0
  %1661 = vmatmul.mubr.f32.gmra.mrb[0].mxu0 %v1552
  %v1662 = vpop.f32.mrb[0].mxu0
  %v1663 = vadd.f32 0.0, %v1662
  %v1664 = vpop.f32.mrb[0].mxu0
  %1665 = vmatprep.mubr.f32.mxu0 0.0
  %1666 = vmatmul.mubr.f32.gmra.mrb[0].mxu0 %v1553
  %v1667 = vpop.f32.mrb[0].mxu0
  %v1668 = vadd.f32 0.0, %v1667
  %v1669 = vpop.f32.mrb[0].mxu0
  %1670 = vmatprep.mubr.f32.mxu0 0.0
  %1671 = vmatmul.mubr.f32.gmra.mrb[0].mxu0 %v1554
  %v1672 = vpop.f32.mrb[0].mxu0
  %v1673 = vadd.f32 0.0, %v1672
  %v1674 = vpop.f32.mrb[0].mxu0
  %1675 = vmatprep.mubr.f32.mxu0 0.0
  %1676 = vmatmul.mubr.f32.gmra.mrb[0].mxu0 %v1555
  %v1677 = vpop.f32.mrb[0].mxu0
  %v1678 = vadd.f32 0.0, %v1677
  %v1679 = vpop.f32.mrb[0].mxu0
  %1680 = vmatprep.mubr.f32.mxu0 0.0
  %1681 = vmatmul.mubr.f32.gmra.mrb[0].mxu0 %v1556
  %v1682 = vpop.f32.mrb[0].mxu0
  %v1683 = vadd.f32 0.0, %v1682
  %v1684 = vpop.f32.mrb[0].mxu0
  %1685 = vmatprep.mubr.f32.mxu0 0.0
  %1686 = vmatmul.mubr.f32.gmra.mrb[0].mxu0 %v1557
  %v1687 = vpop.f32.mrb[0].mxu0
  %v1688 = vadd.f32 0.0, %v1687
  %v1689 = vpop.f32.mrb[0].mxu0
  %1690 = vmatprep.mubr.f32.mxu0 0.0
  %1691 = vmatmul.mubr.f32.gmra.mrb[0].mxu0 %v1558
  %v1692 = vpop.f32.mrb[0].mxu0
  %v1693 = vadd.f32 0.0, %v1692
  %v1694 = vpop.f32.mrb[0].mxu0
  %1695 = vmatprep.mubr.f32.mxu0 0.0
  %1696 = vmatmul.mubr.f32.gmra.mrb[0].mxu0 %v1559
  %v1697 = vpop.f32.mrb[0].mxu0
  %v1698 = vadd.f32 0.0, %v1697
  %v1699 = vpop.f32.mrb[0].mxu0
  %1700 = vmatprep.mubr.f32.mxu0 0.0
  %1701 = vmatmul.mubr.f32.gmra.mrb[0].mxu0 %v1560
  %v1702 = vpop.f32.mrb[0].mxu0
  %v1703 = vadd.f32 0.0, %v1702
  %v1704 = vpop.f32.mrb[0].mxu0
  %1705 = vdwg.mxu0
  %s1706 = scalar_lea.vmem %s1, 64
  %v1707 = vld [vmem:[%s1706] sm:$0xff]
  %v1708 = vld [vmem:[%s1706 + $0x8] sm:$0xff]
  %v1709 = vld [vmem:[%s1706 + $0x10] sm:$0xff]
  %v1710 = vld [vmem:[%s1706 + $0x18] sm:$0xff]
  %v1712 = vsel %vm89, %v1628, 0
  %v1715 = vsel %vm89, %v1633, 0
  %v1718 = vsel %vm89, %v1638, 0
  %v1721 = vsel %vm89, %v1643, 0
  %v1724 = vsel %vm89, %v1648, 0
  %v1727 = vsel %vm89, %v1653, 0
  %v1730 = vsel %vm89, %v1658, 0
  %v1733 = vsel %vm89, %v1663, 0
  %v1736 = vsel %vm89, %v1668, 0
  %v1739 = vsel %vm89, %v1673, 0
  %v1742 = vsel %vm89, %v1678, 0
  %v1745 = vsel %vm89, %v1683, 0
  %v1748 = vsel %vm89, %v1688, 0
  %v1751 = vsel %vm89, %v1693, 0
  %v1754 = vsel %vm89, %v1698, 0
  %v1757 = vsel %vm89, %v1703, 0
  %1759 = vmatprep.subr.mxu0 0.0
  %1760 = vmatpush1.msra.mxu0 %v1707
  %1761 = vmatprep.subr.mxu0 0.0
  %1762 = vmatpush1.msra.mxu0 %v1708
  %1763 = vmatprep.subr.mxu0 0.0
  %1764 = vmatpush1.msra.mxu0 %v1709
  %1765 = vmatprep.subr.mxu0 0.0
  %1766 = vmatpush1.msra.mxu0 %v1710
  %1767 = vmatprep.subr.mxu0 0.0
  %1768 = vmatpush1.msra.mxu0 0.0
  %1769 = vmatprep.subr.mxu0 0.0
  %1770 = vmatpush1.msra.mxu0 0.0
  %1771 = vmatprep.subr.mxu0 0.0
  %1772 = vmatpush1.msra.mxu0 0.0
  %1773 = vmatprep.subr.mxu0 0.0
  %1774 = vmatpush1.msra.mxu0 0.0
  %1775 = vmatprep.subr.mxu0 0.0
  %1776 = vmatpush1.msra.mxu0 0.0
  %1777 = vmatprep.subr.mxu0 0.0
  %1778 = vmatpush1.msra.mxu0 0.0
  %1779 = vmatprep.subr.mxu0 0.0
  %1780 = vmatpush1.msra.mxu0 0.0
  %1781 = vmatprep.subr.mxu0 0.0
  %1782 = vmatpush1.msra.mxu0 0.0
  %1783 = vmatprep.subr.mxu0 0.0
  %1784 = vmatpush1.msra.mxu0 0.0
  %1785 = vmatprep.subr.mxu0 0.0
  %1786 = vmatpush1.msra.mxu0 0.0
  %1787 = vmatprep.subr.mxu0 0.0
  %1788 = vmatpush1.msra.mxu0 0.0
  %1789 = vmatprep.subr.mxu0 0.0
  %1790 = vmatpush1.msra.mxu0 0.0
  %1791 = vmatprep.subr.mxu0 0.0
  %1792 = vmatpush1.msra.mxu0 0.0
  %1793 = vmatprep.subr.mxu0 0.0
  %1794 = vmatpush1.msra.mxu0 0.0
  %1795 = vmatprep.subr.mxu0 0.0
  %1796 = vmatpush1.msra.mxu0 0.0
  %1797 = vmatprep.subr.mxu0 0.0
  %1798 = vmatpush1.msra.mxu0 0.0
  %1799 = vmatprep.subr.mxu0 0.0
  %1800 = vmatpush1.msra.mxu0 0.0
  %1801 = vmatprep.subr.mxu0 0.0
  %1802 = vmatpush1.msra.mxu0 0.0
  %1803 = vmatprep.subr.mxu0 0.0
  %1804 = vmatpush1.msra.mxu0 0.0
  %1805 = vmatprep.subr.mxu0 0.0
  %1806 = vmatpush1.msra.mxu0 0.0
  %1807 = vmatprep.subr.mxu0 0.0
  %1808 = vmatpush1.msra.mxu0 0.0
  %1809 = vmatprep.subr.mxu0 0.0
  %1810 = vmatpush1.msra.mxu0 0.0
  %1811 = vmatprep.subr.mxu0 0.0
  %1812 = vmatpush1.msra.mxu0 0.0
  %1813 = vmatprep.subr.mxu0 0.0
  %1814 = vmatpush1.msra.mxu0 0.0
  %1815 = vmatprep.subr.mxu0 0.0
  %1816 = vmatpush1.msra.mxu0 0.0
  %1817 = vmatprep.subr.mxu0 0.0
  %1818 = vmatpush1.msra.mxu0 0.0
  %1819 = vmatprep.subr.mxu0 0.0
  %1820 = vmatpush1.msra.mxu0 0.0
  %1821 = vmatprep.subr.mxu0 0.0
  %1822 = vmatpush1.msra.mxu0 0.0
  %1823 = vmatprep.mubr.f32.mxu0 0.0
  %1824 = vmatmul.mubr.f32.gmra.mrb[0].mxu0 %v1712
  %v1825 = vpop.f32.mrb[0].mxu0
  %v1826 = vadd.f32 0.0, %v1825
  %v1827 = vpop.f32.mrb[0].mxu0
  %1828 = vmatprep.mubr.f32.mxu0 0.0
  %1829 = vmatmul.mubr.f32.gmra.mrb[0].mxu0 %v1715
  %v1830 = vpop.f32.mrb[0].mxu0
  %v1831 = vadd.f32 0.0, %v1830
  %v1832 = vpop.f32.mrb[0].mxu0
  %1833 = vmatprep.mubr.f32.mxu0 0.0
  %1834 = vmatmul.mubr.f32.gmra.mrb[0].mxu0 %v1718
  %v1835 = vpop.f32.mrb[0].mxu0
  %v1836 = vadd.f32 0.0, %v1835
  %v1837 = vpop.f32.mrb[0].mxu0
  %1838 = vmatprep.mubr.f32.mxu0 0.0
  %1839 = vmatmul.mubr.f32.gmra.mrb[0].mxu0 %v1721
  %v1840 = vpop.f32.mrb[0].mxu0
  %v1841 = vadd.f32 0.0, %v1840
  %v1842 = vpop.f32.mrb[0].mxu0
  %1843 = vmatprep.mubr.f32.mxu0 0.0
  %1844 = vmatmul.mubr.f32.gmra.mrb[0].mxu0 %v1724
  %v1845 = vpop.f32.mrb[0].mxu0
  %v1846 = vadd.f32 0.0, %v1845
  %v1847 = vpop.f32.mrb[0].mxu0
  %1848 = vmatprep.mubr.f32.mxu0 0.0
  %1849 = vmatmul.mubr.f32.gmra.mrb[0].mxu0 %v1727
  %v1850 = vpop.f32.mrb[0].mxu0
  %v1851 = vadd.f32 0.0, %v1850
  %v1852 = vpop.f32.mrb[0].mxu0
  %1853 = vmatprep.mubr.f32.mxu0 0.0
  %1854 = vmatmul.mubr.f32.gmra.mrb[0].mxu0 %v1730
  %v1855 = vpop.f32.mrb[0].mxu0
  %v1856 = vadd.f32 0.0, %v1855
  %v1857 = vpop.f32.mrb[0].mxu0
  %1858 = vmatprep.mubr.f32.mxu0 0.0
  %1859 = vmatmul.mubr.f32.gmra.mrb[0].mxu0 %v1733
  %v1860 = vpop.f32.mrb[0].mxu0
  %v1861 = vadd.f32 0.0, %v1860
  %v1862 = vpop.f32.mrb[0].mxu0
  %1863 = vmatprep.mubr.f32.mxu0 0.0
  %1864 = vmatmul.mubr.f32.gmra.mrb[0].mxu0 %v1736
  %v1865 = vpop.f32.mrb[0].mxu0
  %v1866 = vadd.f32 0.0, %v1865
  %v1867 = vpop.f32.mrb[0].mxu0
  %1868 = vmatprep.mubr.f32.mxu0 0.0
  %1869 = vmatmul.mubr.f32.gmra.mrb[0].mxu0 %v1739
  %v1870 = vpop.f32.mrb[0].mxu0
  %v1871 = vadd.f32 0.0, %v1870
  %v1872 = vpop.f32.mrb[0].mxu0
  %1873 = vmatprep.mubr.f32.mxu0 0.0
  %1874 = vmatmul.mubr.f32.gmra.mrb[0].mxu0 %v1742
  %v1875 = vpop.f32.mrb[0].mxu0
  %v1876 = vadd.f32 0.0, %v1875
  %v1877 = vpop.f32.mrb[0].mxu0
  %1878 = vmatprep.mubr.f32.mxu0 0.0
  %1879 = vmatmul.mubr.f32.gmra.mrb[0].mxu0 %v1745
  %v1880 = vpop.f32.mrb[0].mxu0
  %v1881 = vadd.f32 0.0, %v1880
  %v1882 = vpop.f32.mrb[0].mxu0
  %1883 = vmatprep.mubr.f32.mxu0 0.0
  %1884 = vmatmul.mubr.f32.gmra.mrb[0].mxu0 %v1748
  %v1885 = vpop.f32.mrb[0].mxu0
  %v1886 = vadd.f32 0.0, %v1885
  %v1887 = vpop.f32.mrb[0].mxu0
  %1888 = vmatprep.mubr.f32.mxu0 0.0
  %1889 = vmatmul.mubr.f32.gmra.mrb[0].mxu0 %v1751
  %v1890 = vpop.f32.mrb[0].mxu0
  %v1891 = vadd.f32 0.0, %v1890
  %v1892 = vpop.f32.mrb[0].mxu0
  %1893 = vmatprep.mubr.f32.mxu0 0.0
  %1894 = vmatmul.mubr.f32.gmra.mrb[0].mxu0 %v1754
  %v1895 = vpop.f32.mrb[0].mxu0
  %v1896 = vadd.f32 0.0, %v1895
  %v1897 = vpop.f32.mrb[0].mxu0
  %1898 = vmatprep.mubr.f32.mxu0 0.0
  %1899 = vmatmul.mubr.f32.gmra.mrb[0].mxu0 %v1757
  %v1900 = vpop.f32.mrb[0].mxu0
  %v1901 = vadd.f32 0.0, %v1900
  %v1902 = vpop.f32.mrb[0].mxu0
  %1903 = vdwg.mxu0
  %s1904 = scalar_lea.vmem %s2, 4
  %v1905 = vld [vmem:[%s1904] sm:$0x3]
  %v1906 = vlaneseq
  %v1907 = vshrl.u32 %v1906, 7
  %v1908 = vsub.s32 0, %v1907
  %v1909 = vrot.slane %v1905, %v1908
  %v1910 = vmul.f32 %v1826, %v1909
  %v1911 = vmul.f32 %v1831, %v1909
  %v1912 = vmul.f32 %v1836, %v1909
  %v1913 = vmul.f32 %v1841, %v1909
  %v1914 = vmul.f32 %v1846, %v1909
  %v1915 = vmul.f32 %v1851, %v1909
  %v1916 = vmul.f32 %v1856, %v1909
  %v1917 = vmul.f32 %v1861, %v1909
  %v1918 = vmul.f32 %v1866, %v1909
  %v1919 = vmul.f32 %v1871, %v1909
  %v1920 = vmul.f32 %v1876, %v1909
  %v1921 = vmul.f32 %v1881, %v1909
  %v1922 = vmul.f32 %v1886, %v1909
  %v1923 = vmul.f32 %v1891, %v1909
  %v1924 = vmul.f32 %v1896, %v1909
  %v1925 = vmul.f32 %v1901, %v1909
  %v1926 = vsel %vm89, %v1910, 0.0
  %1927 = vadd.xlane.f32.xlu0 %v1926
  %v1928 = vpop.xlane.xlu0 %1927
  %v1929 = vsel %vm89, %v1911, 0.0
  %1930 = vadd.xlane.f32.xlu0 %v1929
  %v1931 = vpop.xlane.xlu0 %1930
  %v1932 = vsel %vm89, %v1912, 0.0
  %1933 = vadd.xlane.f32.xlu0 %v1932
  %v1934 = vpop.xlane.xlu0 %1933
  %v1935 = vsel %vm89, %v1913, 0.0
  %1936 = vadd.xlane.f32.xlu0 %v1935
  %v1937 = vpop.xlane.xlu0 %1936
  %v1938 = vsel %vm89, %v1914, 0.0
  %1939 = vadd.xlane.f32.xlu0 %v1938
  %v1940 = vpop.xlane.xlu0 %1939
  %v1941 = vsel %vm89, %v1915, 0.0
  %1942 = vadd.xlane.f32.xlu0 %v1941
  %v1943 = vpop.xlane.xlu0 %1942
  %v1944 = vsel %vm89, %v1916, 0.0
  %1945 = vadd.xlane.f32.xlu0 %v1944
  %v1946 = vpop.xlane.xlu0 %1945
  %v1947 = vsel %vm89, %v1917, 0.0
  %1948 = vadd.xlane.f32.xlu0 %v1947
  %v1949 = vpop.xlane.xlu0 %1948
  %v1950 = vsel %vm89, %v1918, 0.0
  %1951 = vadd.xlane.f32.xlu0 %v1950
  %v1952 = vpop.xlane.xlu0 %1951
  %v1953 = vsel %vm89, %v1919, 0.0
  %1954 = vadd.xlane.f32.xlu0 %v1953
  %v1955 = vpop.xlane.xlu0 %1954
  %v1956 = vsel %vm89, %v1920, 0.0
  %1957 = vadd.xlane.f32.xlu0 %v1956
  %v1958 = vpop.xlane.xlu0 %1957
  %v1959 = vsel %vm89, %v1921, 0.0
  %1960 = vadd.xlane.f32.xlu0 %v1959
  %v1961 = vpop.xlane.xlu0 %1960
  %v1962 = vsel %vm89, %v1922, 0.0
  %1963 = vadd.xlane.f32.xlu0 %v1962
  %v1964 = vpop.xlane.xlu0 %1963
  %v1965 = vsel %vm89, %v1923, 0.0
  %1966 = vadd.xlane.f32.xlu0 %v1965
  %v1967 = vpop.xlane.xlu0 %1966
  %v1968 = vsel %vm89, %v1924, 0.0
  %1969 = vadd.xlane.f32.xlu0 %v1968
  %v1970 = vpop.xlane.xlu0 %1969
  %v1971 = vsel %vm89, %v1925, 0.0
  %1972 = vadd.xlane.f32.xlu0 %v1971
  %v1973 = vpop.xlane.xlu0 %1972
  %v1975 = vrot.slane %v1905, 1
  %v1976 = vsel %vm89, %v1975, 0
  %v1979 = vsel %vm89, %v1826, 0
  %v1982 = vsel %vm89, %v1831, 0
  %v1985 = vsel %vm89, %v1836, 0
  %v1988 = vsel %vm89, %v1841, 0
  %v1991 = vsel %vm89, %v1846, 0
  %v1994 = vsel %vm89, %v1851, 0
  %v1997 = vsel %vm89, %v1856, 0
  %v2000 = vsel %vm89, %v1861, 0
  %v2003 = vsel %vm89, %v1866, 0
  %v2006 = vsel %vm89, %v1871, 0
  %v2009 = vsel %vm89, %v1876, 0
  %v2012 = vsel %vm89, %v1881, 0
  %v2015 = vsel %vm89, %v1886, 0
  %v2018 = vsel %vm89, %v1891, 0
  %v2021 = vsel %vm89, %v1896, 0
  %v2024 = vsel %vm89, %v1901, 0
  %2026 = vmatprep.subr.mxu0 0.0
  %2027 = vmatpush1.xpose.msra.mxu0 %v1979
  %2028 = vmatprep.subr.mxu0 0.0
  %2029 = vmatpush1.xpose.msra.mxu0 %v1982
  %2030 = vmatprep.subr.mxu0 0.0
  %2031 = vmatpush1.xpose.msra.mxu0 %v1985
  %2032 = vmatprep.subr.mxu0 0.0
  %2033 = vmatpush1.xpose.msra.mxu0 %v1988
  %2034 = vmatprep.subr.mxu0 0.0
  %2035 = vmatpush1.xpose.msra.mxu0 %v1991
  %2036 = vmatprep.subr.mxu0 0.0
  %2037 = vmatpush1.xpose.msra.mxu0 %v1994
  %2038 = vmatprep.subr.mxu0 0.0
  %2039 = vmatpush1.xpose.msra.mxu0 %v1997
  %2040 = vmatprep.subr.mxu0 0.0
  %2041 = vmatpush1.xpose.msra.mxu0 %v2000
  %2042 = vmatprep.subr.mxu0 0.0
  %2043 = vmatpush1.xpose.msra.mxu0 %v2003
  %2044 = vmatprep.subr.mxu0 0.0
  %2045 = vmatpush1.xpose.msra.mxu0 %v2006
  %2046 = vmatprep.subr.mxu0 0.0
  %2047 = vmatpush1.xpose.msra.mxu0 %v2009
  %2048 = vmatprep.subr.mxu0 0.0
  %2049 = vmatpush1.xpose.msra.mxu0 %v2012
  %2050 = vmatprep.subr.mxu0 0.0
  %2051 = vmatpush1.xpose.msra.mxu0 %v2015
  %2052 = vmatprep.subr.mxu0 0.0
  %2053 = vmatpush1.xpose.msra.mxu0 %v2018
  %2054 = vmatprep.subr.mxu0 0.0
  %2055 = vmatpush1.xpose.msra.mxu0 %v2021
  %2056 = vmatprep.subr.mxu0 0.0
  %2057 = vmatpush1.xpose.msra.mxu0 %v2024
  %2058 = vmatprep.subr.mxu0 0.0
  %2059 = vmatpush1.xpose.msra.mxu0 0.0
  %2060 = vmatprep.subr.mxu0 0.0
  %2061 = vmatpush1.xpose.msra.mxu0 0.0
  %2062 = vmatprep.subr.mxu0 0.0
  %2063 = vmatpush1.xpose.msra.mxu0 0.0
  %2064 = vmatprep.subr.mxu0 0.0
  %2065 = vmatpush1.xpose.msra.mxu0 0.0
  %2066 = vmatprep.subr.mxu0 0.0
  %2067 = vmatpush1.xpose.msra.mxu0 0.0
  %2068 = vmatprep.subr.mxu0 0.0
  %2069 = vmatpush1.xpose.msra.mxu0 0.0
  %2070 = vmatprep.subr.mxu0 0.0
  %2071 = vmatpush1.xpose.msra.mxu0 0.0
  %2072 = vmatprep.subr.mxu0 0.0
  %2073 = vmatpush1.xpose.msra.mxu0 0.0
  %2074 = vmatprep.subr.mxu0 0.0
  %2075 = vmatpush1.xpose.msra.mxu0 0.0
  %2076 = vmatprep.subr.mxu0 0.0
  %2077 = vmatpush1.xpose.msra.mxu0 0.0
  %2078 = vmatprep.subr.mxu0 0.0
  %2079 = vmatpush1.xpose.msra.mxu0 0.0
  %2080 = vmatprep.subr.mxu0 0.0
  %2081 = vmatpush1.xpose.msra.mxu0 0.0
  %2082 = vmatprep.subr.mxu0 0.0
  %2083 = vmatpush1.xpose.msra.mxu0 0.0
  %2084 = vmatprep.subr.mxu0 0.0
  %2085 = vmatpush1.xpose.msra.mxu0 0.0
  %2086 = vmatprep.subr.mxu0 0.0
  %2087 = vmatpush1.xpose.msra.mxu0 0.0
  %2088 = vmatprep.subr.mxu0 0.0
  %2089 = vmatpush1.xpose.msra.mxu0 0.0
  %2090 = vmatprep.mubr.f32.mxu0 0.0
  %2091 = vmatmul.mubr.f32.gmra.mrb[0].mxu0 %v1976
  %v2092 = vpop.f32.mrb[0].mxu0
  %v2093 = vadd.f32 0.0, %v2092
  %v2094 = vpop.f32.mrb[0].mxu0
  %2095 = vdwg.mxu0
  %v2096 = vlaneseq
  %v2097 = vshrl.u32 %v2096, 7
  %v2098 = vsub.s32 0, %v2097
  %v2099 = vrot.slane %v2093, %v2098
  %v2100 = vadd.f32 %v1928, %v2099
  %v2101 = vadd.f32 %v1931, %v2099
  %v2102 = vadd.f32 %v1934, %v2099
  %v2103 = vadd.f32 %v1937, %v2099
  %v2104 = vadd.f32 %v1940, %v2099
  %v2105 = vadd.f32 %v1943, %v2099
  %v2106 = vadd.f32 %v1946, %v2099
  %v2107 = vadd.f32 %v1949, %v2099
  %v2108 = vadd.f32 %v1952, %v2099
  %v2109 = vadd.f32 %v1955, %v2099
  %v2110 = vadd.f32 %v1958, %v2099
  %v2111 = vadd.f32 %v1961, %v2099
  %v2112 = vadd.f32 %v1964, %v2099
  %v2113 = vadd.f32 %v1967, %v2099
  %v2114 = vadd.f32 %v1970, %v2099
  %v2115 = vadd.f32 %v1973, %v2099
  %vm2116 = vcmp.gt.f32.partialorder %v2100, 0.0
  %vm2117 = vcmp.gt.f32.partialorder %v2101, 0.0
  %vm2118 = vcmp.gt.f32.partialorder %v2102, 0.0
  %vm2119 = vcmp.gt.f32.partialorder %v2103, 0.0
  %vm2120 = vcmp.gt.f32.partialorder %v2104, 0.0
  %vm2121 = vcmp.gt.f32.partialorder %v2105, 0.0
  %vm2122 = vcmp.gt.f32.partialorder %v2106, 0.0
  %vm2123 = vcmp.gt.f32.partialorder %v2107, 0.0
  %vm2124 = vcmp.gt.f32.partialorder %v2108, 0.0
  %vm2125 = vcmp.gt.f32.partialorder %v2109, 0.0
  %vm2126 = vcmp.gt.f32.partialorder %v2110, 0.0
  %vm2127 = vcmp.gt.f32.partialorder %v2111, 0.0
  %vm2128 = vcmp.gt.f32.partialorder %v2112, 0.0
  %vm2129 = vcmp.gt.f32.partialorder %v2113, 0.0
  %vm2130 = vcmp.gt.f32.partialorder %v2114, 0.0
  %vm2131 = vcmp.gt.f32.partialorder %v2115, 0.0
  %v2132 = vmul.f32 %v2100, 0.2
  %v2133 = vmul.f32 %v2101, 0.2
  %v2134 = vmul.f32 %v2102, 0.2
  %v2135 = vmul.f32 %v2103, 0.2
  %v2136 = vmul.f32 %v2104, 0.2
  %v2137 = vmul.f32 %v2105, 0.2
  %v2138 = vmul.f32 %v2106, 0.2
  %v2139 = vmul.f32 %v2107, 0.2
  %v2140 = vmul.f32 %v2108, 0.2
  %v2141 = vmul.f32 %v2109, 0.2
  %v2142 = vmul.f32 %v2110, 0.2
  %v2143 = vmul.f32 %v2111, 0.2
  %v2144 = vmul.f32 %v2112, 0.2
  %v2145 = vmul.f32 %v2113, 0.2
  %v2146 = vmul.f32 %v2114, 0.2
  %v2147 = vmul.f32 %v2115, 0.2
  %v2148 = vsel %vm2116, %v2100, %v2132
  %v2149 = vsel %vm2117, %v2101, %v2133
  %v2150 = vsel %vm2118, %v2102, %v2134
  %v2151 = vsel %vm2119, %v2103, %v2135
  %v2152 = vsel %vm2120, %v2104, %v2136
  %v2153 = vsel %vm2121, %v2105, %v2137
  %v2154 = vsel %vm2122, %v2106, %v2138
  %v2155 = vsel %vm2123, %v2107, %v2139
  %v2156 = vsel %vm2124, %v2108, %v2140
  %v2157 = vsel %vm2125, %v2109, %v2141
  %v2158 = vsel %vm2126, %v2110, %v2142
  %v2159 = vsel %vm2127, %v2111, %v2143
  %v2160 = vsel %vm2128, %v2112, %v2144
  %v2161 = vsel %vm2129, %v2113, %v2145
  %v2162 = vsel %vm2130, %v2114, %v2146
  %v2163 = vsel %vm2131, %v2115, %v2147
  %v2164 = vsel %vm53, %v2148, 0.0
  %v2165 = vsel %vm54, %v2149, 0.0
  %v2166 = vsel %vm55, %v2150, 0.0
  %v2167 = vsel %vm56, %v2151, 0.0
  %v2168 = vsel %vm57, %v2152, 0.0
  %v2169 = vsel %vm58, %v2153, 0.0
  %v2170 = vsel %vm59, %v2154, 0.0
  %v2171 = vsel %vm60, %v2155, 0.0
  %v2172 = vsel %vm61, %v2156, 0.0
  %v2173 = vsel %vm62, %v2157, 0.0
  %v2174 = vsel %vm63, %v2158, 0.0
  %v2175 = vsel %vm64, %v2159, 0.0
  %v2176 = vsel %vm65, %v2160, 0.0
  %v2177 = vsel %vm66, %v2161, 0.0
  %v2178 = vsel %vm67, %v2162, 0.0
  %v2179 = vsel %vm68, %v2163, 0.0
  %2180 = vmax.xlane.f32.xlu0 %v2164
  %v2181 = vpop.xlane.xlu0 %2180
  %2182 = vmax.xlane.f32.xlu0 %v2165
  %v2183 = vpop.xlane.xlu0 %2182
  %2184 = vmax.xlane.f32.xlu0 %v2166
  %v2185 = vpop.xlane.xlu0 %2184
  %2186 = vmax.xlane.f32.xlu0 %v2167
  %v2187 = vpop.xlane.xlu0 %2186
  %2188 = vmax.xlane.f32.xlu0 %v2168
  %v2189 = vpop.xlane.xlu0 %2188
  %2190 = vmax.xlane.f32.xlu0 %v2169
  %v2191 = vpop.xlane.xlu0 %2190
  %2192 = vmax.xlane.f32.xlu0 %v2170
  %v2193 = vpop.xlane.xlu0 %2192
  %2194 = vmax.xlane.f32.xlu0 %v2171
  %v2195 = vpop.xlane.xlu0 %2194
  %2196 = vmax.xlane.f32.xlu0 %v2172
  %v2197 = vpop.xlane.xlu0 %2196
  %2198 = vmax.xlane.f32.xlu0 %v2173
  %v2199 = vpop.xlane.xlu0 %2198
  %2200 = vmax.xlane.f32.xlu0 %v2174
  %v2201 = vpop.xlane.xlu0 %2200
  %2202 = vmax.xlane.f32.xlu0 %v2175
  %v2203 = vpop.xlane.xlu0 %2202
  %2204 = vmax.xlane.f32.xlu0 %v2176
  %v2205 = vpop.xlane.xlu0 %2204
  %2206 = vmax.xlane.f32.xlu0 %v2177
  %v2207 = vpop.xlane.xlu0 %2206
  %2208 = vmax.xlane.f32.xlu0 %v2178
  %v2209 = vpop.xlane.xlu0 %2208
  %2210 = vmax.xlane.f32.xlu0 %v2179
  %v2211 = vpop.xlane.xlu0 %2210
  %v2212 = vsub.f32 %v2164, %v2181
  %v2213 = vsub.f32 %v2165, %v2183
  %v2214 = vsub.f32 %v2166, %v2185
  %v2215 = vsub.f32 %v2167, %v2187
  %v2216 = vsub.f32 %v2168, %v2189
  %v2217 = vsub.f32 %v2169, %v2191
  %v2218 = vsub.f32 %v2170, %v2193
  %v2219 = vsub.f32 %v2171, %v2195
  %v2220 = vsub.f32 %v2172, %v2197
  %v2221 = vsub.f32 %v2173, %v2199
  %v2222 = vsub.f32 %v2174, %v2201
  %v2223 = vsub.f32 %v2175, %v2203
  %v2224 = vsub.f32 %v2176, %v2205
  %v2225 = vsub.f32 %v2177, %v2207
  %v2226 = vsub.f32 %v2178, %v2209
  %v2227 = vsub.f32 %v2179, %v2211
  %v2228 = vmul.f32 %v2212, 1.442695
  %v2229 = vpow.pop %v2228
  %v2230 = vmul.f32 %v2213, 1.442695
  %v2231 = vpow.pop %v2230
  %v2232 = vmul.f32 %v2214, 1.442695
  %v2233 = vpow.pop %v2232
  %v2234 = vmul.f32 %v2215, 1.442695
  %v2235 = vpow.pop %v2234
  %v2236 = vmul.f32 %v2216, 1.442695
  %v2237 = vpow.pop %v2236
  %v2238 = vmul.f32 %v2217, 1.442695
  %v2239 = vpow.pop %v2238
  %v2240 = vmul.f32 %v2218, 1.442695
  %v2241 = vpow.pop %v2240
  %v2242 = vmul.f32 %v2219, 1.442695
  %v2243 = vpow.pop %v2242
  %v2244 = vmul.f32 %v2220, 1.442695
  %v2245 = vpow.pop %v2244
  %v2246 = vmul.f32 %v2221, 1.442695
  %v2247 = vpow.pop %v2246
  %v2248 = vmul.f32 %v2222, 1.442695
  %v2249 = vpow.pop %v2248
  %v2250 = vmul.f32 %v2223, 1.442695
  %v2251 = vpow.pop %v2250
  %v2252 = vmul.f32 %v2224, 1.442695
  %v2253 = vpow.pop %v2252
  %v2254 = vmul.f32 %v2225, 1.442695
  %v2255 = vpow.pop %v2254
  %v2256 = vmul.f32 %v2226, 1.442695
  %v2257 = vpow.pop %v2256
  %v2258 = vmul.f32 %v2227, 1.442695
  %v2259 = vpow.pop %v2258
  %2260 = vadd.xlane.f32.xlu0 %v2229
  %v2261 = vpop.xlane.xlu0 %2260
  %2262 = vadd.xlane.f32.xlu0 %v2231
  %v2263 = vpop.xlane.xlu0 %2262
  %2264 = vadd.xlane.f32.xlu0 %v2233
  %v2265 = vpop.xlane.xlu0 %2264
  %2266 = vadd.xlane.f32.xlu0 %v2235
  %v2267 = vpop.xlane.xlu0 %2266
  %2268 = vadd.xlane.f32.xlu0 %v2237
  %v2269 = vpop.xlane.xlu0 %2268
  %2270 = vadd.xlane.f32.xlu0 %v2239
  %v2271 = vpop.xlane.xlu0 %2270
  %2272 = vadd.xlane.f32.xlu0 %v2241
  %v2273 = vpop.xlane.xlu0 %2272
  %2274 = vadd.xlane.f32.xlu0 %v2243
  %v2275 = vpop.xlane.xlu0 %2274
  %2276 = vadd.xlane.f32.xlu0 %v2245
  %v2277 = vpop.xlane.xlu0 %2276
  %2278 = vadd.xlane.f32.xlu0 %v2247
  %v2279 = vpop.xlane.xlu0 %2278
  %2280 = vadd.xlane.f32.xlu0 %v2249
  %v2281 = vpop.xlane.xlu0 %2280
  %2282 = vadd.xlane.f32.xlu0 %v2251
  %v2283 = vpop.xlane.xlu0 %2282
  %2284 = vadd.xlane.f32.xlu0 %v2253
  %v2285 = vpop.xlane.xlu0 %2284
  %2286 = vadd.xlane.f32.xlu0 %v2255
  %v2287 = vpop.xlane.xlu0 %2286
  %2288 = vadd.xlane.f32.xlu0 %v2257
  %v2289 = vpop.xlane.xlu0 %2288
  %2290 = vadd.xlane.f32.xlu0 %v2259
  %v2291 = vpop.xlane.xlu0 %2290
  %v2292 = vrcp.pop %v2261
  %v2293 = vrcp.pop %v2263
  %v2294 = vrcp.pop %v2265
  %v2295 = vrcp.pop %v2267
  %v2296 = vrcp.pop %v2269
  %v2297 = vrcp.pop %v2271
  %v2298 = vrcp.pop %v2273
  %v2299 = vrcp.pop %v2275
  %v2300 = vrcp.pop %v2277
  %v2301 = vrcp.pop %v2279
  %v2302 = vrcp.pop %v2281
  %v2303 = vrcp.pop %v2283
  %v2304 = vrcp.pop %v2285
  %v2305 = vrcp.pop %v2287
  %v2306 = vrcp.pop %v2289
  %v2307 = vrcp.pop %v2291
  %v2308 = vmul.f32 %v2261, %v2292
  %v2309 = vmul.f32 %v2263, %v2293
  %v2310 = vmul.f32 %v2265, %v2294
  %v2311 = vmul.f32 %v2267, %v2295
  %v2312 = vmul.f32 %v2269, %v2296
  %v2313 = vmul.f32 %v2271, %v2297
  %v2314 = vmul.f32 %v2273, %v2298
  %v2315 = vmul.f32 %v2275, %v2299
  %v2316 = vmul.f32 %v2277, %v2300
  %v2317 = vmul.f32 %v2279, %v2301
  %v2318 = vmul.f32 %v2281, %v2302
  %v2319 = vmul.f32 %v2283, %v2303
  %v2320 = vmul.f32 %v2285, %v2304
  %v2321 = vmul.f32 %v2287, %v2305
  %v2322 = vmul.f32 %v2289, %v2306
  %v2323 = vmul.f32 %v2291, %v2307
  %v2324 = vsub.f32 2.0, %v2308
  %v2325 = vsub.f32 2.0, %v2309
  %v2326 = vsub.f32 2.0, %v2310
  %v2327 = vsub.f32 2.0, %v2311
  %v2328 = vsub.f32 2.0, %v2312
  %v2329 = vsub.f32 2.0, %v2313
  %v2330 = vsub.f32 2.0, %v2314
  %v2331 = vsub.f32 2.0, %v2315
  %v2332 = vsub.f32 2.0, %v2316
  %v2333 = vsub.f32 2.0, %v2317
  %v2334 = vsub.f32 2.0, %v2318
  %v2335 = vsub.f32 2.0, %v2319
  %v2336 = vsub.f32 2.0, %v2320
  %v2337 = vsub.f32 2.0, %v2321
  %v2338 = vsub.f32 2.0, %v2322
  %v2339 = vsub.f32 2.0, %v2323
  %v2340 = vmul.f32 %v2292, %v2324
  %v2341 = vmul.f32 %v2293, %v2325
  %v2342 = vmul.f32 %v2294, %v2326
  %v2343 = vmul.f32 %v2295, %v2327
  %v2344 = vmul.f32 %v2296, %v2328
  %v2345 = vmul.f32 %v2297, %v2329
  %v2346 = vmul.f32 %v2298, %v2330
  %v2347 = vmul.f32 %v2299, %v2331
  %v2348 = vmul.f32 %v2300, %v2332
  %v2349 = vmul.f32 %v2301, %v2333
  %v2350 = vmul.f32 %v2302, %v2334
  %v2351 = vmul.f32 %v2303, %v2335
  %v2352 = vmul.f32 %v2304, %v2336
  %v2353 = vmul.f32 %v2305, %v2337
  %v2354 = vmul.f32 %v2306, %v2338
  %v2355 = vmul.f32 %v2307, %v2339
  %v2356 = vmul.f32 %v2229, %v2340
  %v2357 = vmul.f32 %v2231, %v2341
  %v2358 = vmul.f32 %v2233, %v2342
  %v2359 = vmul.f32 %v2235, %v2343
  %v2360 = vmul.f32 %v2237, %v2344
  %v2361 = vmul.f32 %v2239, %v2345
  %v2362 = vmul.f32 %v2241, %v2346
  %v2363 = vmul.f32 %v2243, %v2347
  %v2364 = vmul.f32 %v2245, %v2348
  %v2365 = vmul.f32 %v2247, %v2349
  %v2366 = vmul.f32 %v2249, %v2350
  %v2367 = vmul.f32 %v2251, %v2351
  %v2368 = vmul.f32 %v2253, %v2352
  %v2369 = vmul.f32 %v2255, %v2353
  %v2370 = vmul.f32 %v2257, %v2354
  %v2371 = vmul.f32 %v2259, %v2355
  %2372 = vmatprep.subr.mxu0 0.0
  %2373 = vmatpush1.msra.mxu0 %v1826
  %2374 = vmatprep.subr.mxu0 0.0
  %2375 = vmatpush1.msra.mxu0 %v1831
  %2376 = vmatprep.subr.mxu0 0.0
  %2377 = vmatpush1.msra.mxu0 %v1836
  %2378 = vmatprep.subr.mxu0 0.0
  %2379 = vmatpush1.msra.mxu0 %v1841
  %2380 = vmatprep.subr.mxu0 0.0
  %2381 = vmatpush1.msra.mxu0 %v1846
  %2382 = vmatprep.subr.mxu0 0.0
  %2383 = vmatpush1.msra.mxu0 %v1851
  %2384 = vmatprep.subr.mxu0 0.0
  %2385 = vmatpush1.msra.mxu0 %v1856
  %2386 = vmatprep.subr.mxu0 0.0
  %2387 = vmatpush1.msra.mxu0 %v1861
  %2388 = vmatprep.subr.mxu0 0.0
  %2389 = vmatpush1.msra.mxu0 %v1866
  %2390 = vmatprep.subr.mxu0 0.0
  %2391 = vmatpush1.msra.mxu0 %v1871
  %2392 = vmatprep.subr.mxu0 0.0
  %2393 = vmatpush1.msra.mxu0 %v1876
  %2394 = vmatprep.subr.mxu0 0.0
  %2395 = vmatpush1.msra.mxu0 %v1881
  %2396 = vmatprep.subr.mxu0 0.0
  %2397 = vmatpush1.msra.mxu0 %v1886
  %2398 = vmatprep.subr.mxu0 0.0
  %2399 = vmatpush1.msra.mxu0 %v1891
  %2400 = vmatprep.subr.mxu0 0.0
  %2401 = vmatpush1.msra.mxu0 %v1896
  %2402 = vmatprep.subr.mxu0 0.0
  %2403 = vmatpush1.msra.mxu0 %v1901
  %2404 = vmatprep.subr.mxu0 0.0
  %2405 = vmatpush1.msra.mxu0 0.0
  %2406 = vmatprep.subr.mxu0 0.0
  %2407 = vmatpush1.msra.mxu0 0.0
  %2408 = vmatprep.subr.mxu0 0.0
  %2409 = vmatpush1.msra.mxu0 0.0
  %2410 = vmatprep.subr.mxu0 0.0
  %2411 = vmatpush1.msra.mxu0 0.0
  %2412 = vmatprep.subr.mxu0 0.0
  %2413 = vmatpush1.msra.mxu0 0.0
  %2414 = vmatprep.subr.mxu0 0.0
  %2415 = vmatpush1.msra.mxu0 0.0
  %2416 = vmatprep.subr.mxu0 0.0
  %2417 = vmatpush1.msra.mxu0 0.0
  %2418 = vmatprep.subr.mxu0 0.0
  %2419 = vmatpush1.msra.mxu0 0.0
  %2420 = vmatprep.subr.mxu0 0.0
  %2421 = vmatpush1.msra.mxu0 0.0
  %2422 = vmatprep.subr.mxu0 0.0
  %2423 = vmatpush1.msra.mxu0 0.0
  %2424 = vmatprep.subr.mxu0 0.0
  %2425 = vmatpush1.msra.mxu0 0.0
  %2426 = vmatprep.subr.mxu0 0.0
  %2427 = vmatpush1.msra.mxu0 0.0
  %2428 = vmatprep.subr.mxu0 0.0
  %2429 = vmatpush1.msra.mxu0 0.0
  %2430 = vmatprep.subr.mxu0 0.0
  %2431 = vmatpush1.msra.mxu0 0.0
  %2432 = vmatprep.subr.mxu0 0.0
  %2433 = vmatpush1.msra.mxu0 0.0
  %2434 = vmatprep.subr.mxu0 0.0
  %2435 = vmatpush1.msra.mxu0 0.0
  %2436 = vmatprep.mubr.f32.mxu0 0.0
  %2437 = vmatmul.mubr.f32.gmra.mrb[0].mxu0 %v2356
  %v2438 = vpop.f32.mrb[0].mxu0
  %v2439 = vadd.f32 0.0, %v2438
  %v2440 = vpop.f32.mrb[0].mxu0
  %2441 = vmatprep.mubr.f32.mxu0 0.0
  %2442 = vmatmul.mubr.f32.gmra.mrb[0].mxu0 %v2357
  %v2443 = vpop.f32.mrb[0].mxu0
  %v2444 = vadd.f32 0.0, %v2443
  %v2445 = vpop.f32.mrb[0].mxu0
  %2446 = vmatprep.mubr.f32.mxu0 0.0
  %2447 = vmatmul.mubr.f32.gmra.mrb[0].mxu0 %v2358
  %v2448 = vpop.f32.mrb[0].mxu0
  %v2449 = vadd.f32 0.0, %v2448
  %v2450 = vpop.f32.mrb[0].mxu0
  %2451 = vmatprep.mubr.f32.mxu0 0.0
  %2452 = vmatmul.mubr.f32.gmra.mrb[0].mxu0 %v2359
  %v2453 = vpop.f32.mrb[0].mxu0
  %v2454 = vadd.f32 0.0, %v2453
  %v2455 = vpop.f32.mrb[0].mxu0
  %2456 = vmatprep.mubr.f32.mxu0 0.0
  %2457 = vmatmul.mubr.f32.gmra.mrb[0].mxu0 %v2360
  %v2458 = vpop.f32.mrb[0].mxu0
  %v2459 = vadd.f32 0.0, %v2458
  %v2460 = vpop.f32.mrb[0].mxu0
  %2461 = vmatprep.mubr.f32.mxu0 0.0
  %2462 = vmatmul.mubr.f32.gmra.mrb[0].mxu0 %v2361
  %v2463 = vpop.f32.mrb[0].mxu0
  %v2464 = vadd.f32 0.0, %v2463
  %v2465 = vpop.f32.mrb[0].mxu0
  %2466 = vmatprep.mubr.f32.mxu0 0.0
  %2467 = vmatmul.mubr.f32.gmra.mrb[0].mxu0 %v2362
  %v2468 = vpop.f32.mrb[0].mxu0
  %v2469 = vadd.f32 0.0, %v2468
  %v2470 = vpop.f32.mrb[0].mxu0
  %2471 = vmatprep.mubr.f32.mxu0 0.0
  %2472 = vmatmul.mubr.f32.gmra.mrb[0].mxu0 %v2363
  %v2473 = vpop.f32.mrb[0].mxu0
  %v2474 = vadd.f32 0.0, %v2473
  %v2475 = vpop.f32.mrb[0].mxu0
  %2476 = vmatprep.mubr.f32.mxu0 0.0
  %2477 = vmatmul.mubr.f32.gmra.mrb[0].mxu0 %v2364
  %v2478 = vpop.f32.mrb[0].mxu0
  %v2479 = vadd.f32 0.0, %v2478
  %v2480 = vpop.f32.mrb[0].mxu0
  %2481 = vmatprep.mubr.f32.mxu0 0.0
  %2482 = vmatmul.mubr.f32.gmra.mrb[0].mxu0 %v2365
  %v2483 = vpop.f32.mrb[0].mxu0
  %v2484 = vadd.f32 0.0, %v2483
  %v2485 = vpop.f32.mrb[0].mxu0
  %2486 = vmatprep.mubr.f32.mxu0 0.0
  %2487 = vmatmul.mubr.f32.gmra.mrb[0].mxu0 %v2366
  %v2488 = vpop.f32.mrb[0].mxu0
  %v2489 = vadd.f32 0.0, %v2488
  %v2490 = vpop.f32.mrb[0].mxu0
  %2491 = vmatprep.mubr.f32.mxu0 0.0
  %2492 = vmatmul.mubr.f32.gmra.mrb[0].mxu0 %v2367
  %v2493 = vpop.f32.mrb[0].mxu0
  %v2494 = vadd.f32 0.0, %v2493
  %v2495 = vpop.f32.mrb[0].mxu0
  %2496 = vmatprep.mubr.f32.mxu0 0.0
  %2497 = vmatmul.mubr.f32.gmra.mrb[0].mxu0 %v2368
  %v2498 = vpop.f32.mrb[0].mxu0
  %v2499 = vadd.f32 0.0, %v2498
  %v2500 = vpop.f32.mrb[0].mxu0
  %2501 = vmatprep.mubr.f32.mxu0 0.0
  %2502 = vmatmul.mubr.f32.gmra.mrb[0].mxu0 %v2369
  %v2503 = vpop.f32.mrb[0].mxu0
  %v2504 = vadd.f32 0.0, %v2503
  %v2505 = vpop.f32.mrb[0].mxu0
  %2506 = vmatprep.mubr.f32.mxu0 0.0
  %2507 = vmatmul.mubr.f32.gmra.mrb[0].mxu0 %v2370
  %v2508 = vpop.f32.mrb[0].mxu0
  %v2509 = vadd.f32 0.0, %v2508
  %v2510 = vpop.f32.mrb[0].mxu0
  %2511 = vmatprep.mubr.f32.mxu0 0.0
  %2512 = vmatmul.mubr.f32.gmra.mrb[0].mxu0 %v2371
  %v2513 = vpop.f32.mrb[0].mxu0
  %v2514 = vadd.f32 0.0, %v2513
  %v2515 = vpop.f32.mrb[0].mxu0
  %2516 = vdwg.mxu0
  %2517 = vst.msk [vmem:[%s4] sm:$0xff] %vm89, %v2439
  %2518 = vst.msk [vmem:[%s4 + $0x8] sm:$0xff] %vm89, %v2444
  %2519 = vst.msk [vmem:[%s4 + $0x10] sm:$0xff] %vm89, %v2449
  %2520 = vst.msk [vmem:[%s4 + $0x18] sm:$0xff] %vm89, %v2454
  %2521 = vst.msk [vmem:[%s4 + $0x20] sm:$0xff] %vm89, %v2459
  %2522 = vst.msk [vmem:[%s4 + $0x28] sm:$0xff] %vm89, %v2464
  %2523 = vst.msk [vmem:[%s4 + $0x30] sm:$0xff] %vm89, %v2469
  %2524 = vst.msk [vmem:[%s4 + $0x38] sm:$0xff] %vm89, %v2474
  %2525 = vst.msk [vmem:[%s4 + $0x40] sm:$0xff] %vm89, %v2479
  %2526 = vst.msk [vmem:[%s4 + $0x48] sm:$0xff] %vm89, %v2484
  %2527 = vst.msk [vmem:[%s4 + $0x50] sm:$0xff] %vm89, %v2489
  %2528 = vst.msk [vmem:[%s4 + $0x58] sm:$0xff] %vm89, %v2494
  %2529 = vst.msk [vmem:[%s4 + $0x60] sm:$0xff] %vm89, %v2499
  %2530 = vst.msk [vmem:[%s4 + $0x68] sm:$0xff] %vm89, %v2504
  %2531 = vst.msk [vmem:[%s4 + $0x70] sm:$0xff] %vm89, %v2509
  %2532 = vst.msk [vmem:[%s4 + $0x78] sm:$0xff] %vm89, %v2514
  // Predicated region
  $region18: #{own_gat_model_forward.1} parent=0 // pred_check
    _
  $region19: #{own_gat_model_forward.1} parent=0 // pred_check_branch
    %2534 = sbr.rel (0) target = $region21
  $region20: #{own_gat_model_forward.1} parent=0 // pred_region
    _
  $region21: #{own_gat_model_forward.1} parent=0 // pred_fallthru
    _
  // Predicated region
  $region22: #{own_gat_model_forward.1} parent=0 // pred_check
    _
  $region23: #{own_gat_model_forward.1} parent=0 // pred_check_branch
    %2536 = sbr.rel (0) target = $region25
  $region24: #{own_gat_model_forward.1} parent=0 // pred_region
    _
  $region25: #{own_gat_model_forward.1} parent=0 // pred_fallthru
    _

</llo_original>
